<compile_context>
chip_gen: v5e
topology: v5e:2x2
jax: 0.10.0
libtpu: 0.0.40
codegen_flags: <defaults>
</compile_context>

<pallas_src>
import functools

import jax
import jax.numpy as jnp
from jax.experimental import pallas as pl
from jax.experimental.pallas import tpu as pltpu


# --------------------------------------------------------------------------
# Pallas kernel: one TransformerDecoderLayer for one batch element.
# --------------------------------------------------------------------------
def _decoder_layer_kernel(
    x_ref,
    wqkv_ref, bqkv_ref,        # fused in-projection: (D, 3D) bf16, (1, 3D) f32
    wo_ref, bo_ref,            # out projection:      (D, D) bf16, (1, D) f32
    g1_ref, be1_ref,           # layernorm 1 (gamma, beta)
    wa1_ref, ba1_ref,          # affine1
    wa2_ref, ba2_ref,          # affine2
    g2_ref, be2_ref,           # layernorm 2 (gamma, beta)
    out_ref,
    *, nheads, causal, q_tile):
  x = x_ref[0]                                  # (L, D) bf16 activations
  L, D = x.shape
  dh = D // nheads

  # ---- fused QKV projection: ONE bf16 MXU matmul, f32 accumulation ----------
  # (the 1/sqrt(dh) softmax scale is pre-folded into the Q columns host-side)
  qkv = jnp.dot(x, wqkv_ref[...],
                preferred_element_type=jnp.float32) + bqkv_ref[0]   # (L, 3D) f32

  # Head-major Q/K/V built ONCE per layer (not per q-tile); bf16 for the MXU.
  def split_heads(base):
    return jnp.stack(
        [qkv[:, base + h * dh: base + (h + 1) * dh].astype(jnp.bfloat16)
         for h in range(nheads)], axis=0)                           # (H, L, dh)

  q3 = split_heads(0)
  k3 = split_heads(D)
  v3 = split_heads(2 * D)

  def layer_norm(t, g_ref, b_ref):
    mu = jnp.mean(t, axis=-1, keepdims=True)
    var = jnp.mean(jnp.square(t - mu), axis=-1, keepdims=True)
    return (t - mu) * jax.lax.rsqrt(var + 1e-5) * g_ref[0] + b_ref[0]

  # ---- row-wise tiles: attention + residual + LN + FFN + LN at (TQ, D) ------
  for r0 in range(0, L, q_tile):                # static loop (L is compile-time)
    tq = min(q_tile, L - r0)                    # ragged tail handled statically
    kv = r0 + tq if causal else L               # causal: skip fully-masked K blocks
    q_t = q3[:, r0:r0 + tq, :]                  # (H, TQ, dh) sublane slice, bf16
    k_t = k3[:, :kv, :]
    v_t = v3[:, :kv, :]

    # scores for all heads in one batched MXU call: (H, TQ, KV) f32
    s = jax.lax.dot_general(q_t, k_t, (((2,), (2,)), ((0,), (0,))),
                            preferred_element_type=jnp.float32)
    if causal:
      row = r0 + jax.lax.broadcasted_iota(jnp.int32, (1, tq, kv), 1)
      col = jax.lax.broadcasted_iota(jnp.int32, (1, tq, kv), 2)
      s = jnp.where(col <= row, s, -1e30)       # 2D mask, broadcast over heads
    m = jnp.max(s, axis=-1, keepdims=True)
    e = jnp.exp(s - m)                          # f32 on VPU/EUP
    p = e * pl.reciprocal(jnp.sum(e, axis=-1, keepdims=True), approx=True)
    att = jax.lax.dot_general(p.astype(jnp.bfloat16), v_t,
                              (((2,), (1,)), ((0,), (0,))),
                              preferred_element_type=jnp.float32)   # (H, TQ, dh)

    # Concat heads on the lane axis, then ONE full-depth (TQ,D)x(D,D) projection.
    att_cat = jnp.concatenate(
        [att[h].astype(jnp.bfloat16) for h in range(nheads)], axis=-1)
    y_t = jnp.dot(att_cat, wo_ref[...],
                  preferred_element_type=jnp.float32) + bo_ref[0]   # (TQ, D) f32

    # residual + layernorm + feed-forward, all row-wise on this tile (f32 math).
    x_t = x[r0:r0 + tq, :].astype(jnp.float32)
    h1 = layer_norm(x_t + y_t, g1_ref, be1_ref)
    r = jnp.maximum(
        jnp.dot(h1.astype(jnp.bfloat16), wa1_ref[...],
                preferred_element_type=jnp.float32) + ba1_ref[0], 0.0)
    # TODO(synk): attn_dropout / relu_dropout default to 0; dropout not implemented.
    o_t = layer_norm(
        r + jnp.dot(r.astype(jnp.bfloat16), wa2_ref[...],
                    preferred_element_type=jnp.float32) + ba2_ref[0],
        g2_ref, be2_ref)
    out_ref[0, r0:r0 + tq, :] = o_t.astype(out_ref.dtype)   # lane-dense tile store


# --------------------------------------------------------------------------
# Generation-aware tiling / VMEM budget.
# --------------------------------------------------------------------------
def _vmem_budget_bytes():
  cap = 64 * 1024 * 1024                      # conservative default (v7x-sized)
  try:
    cap = int(getattr(pltpu.get_tpu_info(), "vmem_capacity_bytes", cap))
  except Exception:
    pass
  # ~48 MiB on 64 MiB parts (v7x), ~96 MiB on 128 MiB parts (v5e/v6e).
  return (cap * 3) // 4


def _pick_q_tile(L, nheads, vmem_budget):
  # Two live f32 (H, TQ, KV) tensors (scores + exp) dominate per-tile VMEM; keep
  # them under ~1/3 of the budget.  Tiles are multiples of 8 sublanes; ragged
  # tails are handled by a smaller static final tile inside the kernel.
  per_row = 8 * nheads * L
  t = (vmem_budget // 3) // max(per_row, 1)
  t = max(8, min(256, (t // 8) * 8))
  return min(L, t)


# --------------------------------------------------------------------------
# Wrapper: one pallas_call per layer, grid over batch ("parallel" -> megacore).
# --------------------------------------------------------------------------
def decoder_layer_pallas(x, params, nheads, causal=False, out_dtype=jnp.float32):
  B, L, D = x.shape
  budget = _vmem_budget_bytes()
  q_tile = _pick_q_tile(L, nheads, budget)
  in_specs = [pl.BlockSpec((1, L, D), lambda b: (b, 0, 0))]
  for p in params:  # weights/biases: same (whole) block for every grid step
    in_specs.append(pl.BlockSpec(p.shape, lambda b, _n=p.ndim: (0,) * _n))
  out_spec = pl.BlockSpec((1, L, D), lambda b: (b, 0, 0))
  kernel = functools.partial(_decoder_layer_kernel,
                             nheads=nheads, causal=causal, q_tile=q_tile)
  return pl.pallas_call(
      kernel,
      out_shape=jax.ShapeDtypeStruct((B, L, D), out_dtype),
      grid=(B,),
      in_specs=in_specs,
      out_specs=out_spec,
      compiler_params=pltpu.CompilerParams(
          dimension_semantics=("parallel",),
          vmem_limit_bytes=budget),
  )(x, *params)


# --------------------------------------------------------------------------
# Glue (plain JAX): positional encodings, layer stacking, params.
# --------------------------------------------------------------------------
def add_positional_encodings(x):
  # Mirrors add_positional_encodings(x, dmodel) (dmodel is unused there).
  # Note: like the torch original, 2**k overflows f32 for D >= 258 (kept for parity).
  B, L, D = x.shape
  t = jnp.linspace(0.0, jnp.pi, L)
  freqs = 2.0 ** jnp.arange(D // 2, dtype=jnp.float32)
  ang = t[:, None] * freqs[None, :]                                   # (L, D//2)
  sinusoids = jnp.concatenate([jnp.cos(ang), jnp.sin(ang)], axis=-1)  # (L, D)
  return x + sinusoids[None, :, :]


def transformer_decoder_forward(x, all_params, nheads, causal=False):
  x = add_positional_encodings(x)
  n = len(all_params)
  h = x.astype(jnp.bfloat16)        # inter-layer activations kept in bf16
  for i, params in enumerate(all_params):
    out_dtype = jnp.float32 if i == n - 1 else jnp.bfloat16
    h = decoder_layer_pallas(h, params, nheads, causal, out_dtype=out_dtype)
  return h


def init_layer_params(key, dim, nheads):
  ks = jax.random.split(key, 8)
  dh = dim // nheads
  scale = 1.0 / (dh ** 0.5)

  def w(k, din, dout):
    return jax.random.normal(k, (din, dout), jnp.float32) / jnp.sqrt(din)

  def b(k, dout):
    return 0.01 * jax.random.normal(k, (1, dout), jnp.float32)

  # Fused Q|K|V projection with the 1/sqrt(dh) softmax scale folded into the
  # Q columns (host-side, one-time).  Weights stored bf16 (MXU-native).
  wqkv = w(ks[0], dim, 3 * dim)
  bqkv = b(ks[1], 3 * dim)
  wqkv = wqkv.at[:, :dim].multiply(scale).astype(jnp.bfloat16)
  bqkv = bqkv.at[:, :dim].multiply(scale)
  wo, bo = w(ks[2], dim, dim).astype(jnp.bfloat16), b(ks[3], dim)
  wa1, ba1 = w(ks[4], dim, dim).astype(jnp.bfloat16), b(ks[5], dim)
  wa2, ba2 = w(ks[6], dim, dim).astype(jnp.bfloat16), b(ks[7], dim)
  g1 = jnp.ones((1, dim), jnp.float32)
  be1 = jnp.zeros((1, dim), jnp.float32)
  g2 = jnp.ones((1, dim), jnp.float32)
  be2 = jnp.zeros((1, dim), jnp.float32)
  return (wqkv, bqkv, wo, bo, g1, be1, wa1, ba1, wa2, ba2, g2, be2)


# --------------------------------------------------------------------------
# Pure-JAX reference (mirrors the PyTorch math; weights upcast bf16 -> f32).
# Note: the 1/sqrt(dh) scale is already folded into wqkv/bqkv at init, so the
# reference does not rescale the dots again.
# --------------------------------------------------------------------------
def _ref_layer(x, params, nheads, causal):
  (wqkv, bqkv, wo, bo, g1, be1, wa1, ba1, wa2, ba2, g2, be2) = params
  B, L, D = x.shape
  dh = D // nheads
  qkv = x @ wqkv.astype(jnp.float32) + bqkv[0]                  # (B, L, 3D)
  q, k, v = qkv[..., :D], qkv[..., D:2 * D], qkv[..., 2 * D:]

  def heads(t):
    return jnp.moveaxis(t.reshape(B, L, nheads, dh), 2, 1)      # (B, H, L, dh)

  qs, ks_, vs = heads(q), heads(k), heads(v)
  dots = qs @ jnp.swapaxes(ks_, -1, -2)                         # scale pre-folded
  if causal:
    dots = jnp.where(jnp.tril(jnp.ones((L, L), bool)), dots, -1e30)
  wts = jax.nn.softmax(dots, axis=-1)
  att = jnp.moveaxis(wts @ vs, 1, 2).reshape(B, L, D)
  y = att @ wo.astype(jnp.float32) + bo[0]

  def ln(t, g, b_):
    mu = t.mean(-1, keepdims=True)
    var = ((t - mu) ** 2).mean(-1, keepdims=True)
    return (t - mu) / jnp.sqrt(var + 1e-5) * g[0] + b_[0]

  x1 = ln(x + y, g1, be1)
  r = jax.nn.relu(x1 @ wa1.astype(jnp.float32) + ba1[0])
  return ln(r + (r @ wa2.astype(jnp.float32) + ba2[0]), g2, be2)


def transformer_decoder_ref(x, all_params, nheads, causal=False):
  x = add_positional_encodings(x)
  for params in all_params:
    x = _ref_layer(x, params, nheads, causal)
  return x


# --------------------------------------------------------------------------
if __name__ == "__main__":
  B, L, D, H, NUM_LAYERS = 2, 8, 32, 4, 2  # small shapes; module defaults scaled down
  key = jax.random.PRNGKey(0)
  kx, kp = jax.random.split(key)
  x = jax.random.normal(kx, (B, L, D), jnp.float32)
  all_params = tuple(init_layer_params(jax.random.fold_in(kp, i), D, H)
                     for i in range(NUM_LAYERS))

  for causal in (False, True):
    fwd = jax.jit(functools.partial(transformer_decoder_forward,
                                    nheads=H, causal=causal))
    out = jax.block_until_ready(fwd(x, all_params))
    ref = transformer_decoder_ref(x, all_params, H, causal)
    assert out.shape == (B, L, D) and out.dtype == jnp.float32
    # bf16 MXU operands + bf16 inter-layer activations vs f32 reference math
    # -> ~1% numerical noise.
    assert bool(jnp.allclose(out, ref, rtol=5e-2, atol=5e-2)), \
        "kernel/reference mismatch (causal=%s)" % causal
  print("KERNEL_OK")
</pallas_src>

<mosaic_0001>
module attributes {stable_mosaic.version = 11 : i64} {
  func.func @_decoder_layer_kernel(%arg0: i32, %arg1: memref<1x8x32xbf16, #tpu.memory_space<vmem>>, %arg2: memref<32x96xbf16, #tpu.memory_space<vmem>>, %arg3: memref<1x96xf32, #tpu.memory_space<vmem>>, %arg4: memref<32x32xbf16, #tpu.memory_space<vmem>>, %arg5: memref<1x32xf32, #tpu.memory_space<vmem>>, %arg6: memref<1x32xf32, #tpu.memory_space<vmem>>, %arg7: memref<1x32xf32, #tpu.memory_space<vmem>>, %arg8: memref<32x32xbf16, #tpu.memory_space<vmem>>, %arg9: memref<1x32xf32, #tpu.memory_space<vmem>>, %arg10: memref<32x32xbf16, #tpu.memory_space<vmem>>, %arg11: memref<1x32xf32, #tpu.memory_space<vmem>>, %arg12: memref<1x32xf32, #tpu.memory_space<vmem>>, %arg13: memref<1x32xf32, #tpu.memory_space<vmem>>, %arg14: memref<1x8x32xbf16, #tpu.memory_space<vmem>>) attributes {dimension_semantics = [#tpu.dimension_semantics<parallel>], iteration_bounds = array<i64: 2>, scalar_prefetch = 0 : i64, scratch_operands = 0 : i64, tpu.core_type = #tpu.core_type<tc>, window_params = [{transform_indices = @transform_0, window_bounds = array<i64: 1, 8, 32>}, {pipeline_mode = #tpu.pipeline_mode<synchronous>, transform_indices = @transform_1, window_bounds = array<i64: 32, 96>}, {pipeline_mode = #tpu.pipeline_mode<synchronous>, transform_indices = @transform_2, window_bounds = array<i64: 1, 96>}, {pipeline_mode = #tpu.pipeline_mode<synchronous>, transform_indices = @transform_3, window_bounds = array<i64: 32, 32>}, {pipeline_mode = #tpu.pipeline_mode<synchronous>, transform_indices = @transform_4, window_bounds = array<i64: 1, 32>}, {pipeline_mode = #tpu.pipeline_mode<synchronous>, transform_indices = @transform_5, window_bounds = array<i64: 1, 32>}, {pipeline_mode = #tpu.pipeline_mode<synchronous>, transform_indices = @transform_6, window_bounds = array<i64: 1, 32>}, {pipeline_mode = #tpu.pipeline_mode<synchronous>, transform_indices = @transform_7, window_bounds = array<i64: 32, 32>}, {pipeline_mode = #tpu.pipeline_mode<synchronous>, transform_indices = @transform_8, window_bounds = array<i64: 1, 32>}, {pipeline_mode = #tpu.pipeline_mode<synchronous>, transform_indices = @transform_9, window_bounds = array<i64: 32, 32>}, {pipeline_mode = #tpu.pipeline_mode<synchronous>, transform_indices = @transform_10, window_bounds = array<i64: 1, 32>}, {pipeline_mode = #tpu.pipeline_mode<synchronous>, transform_indices = @transform_11, window_bounds = array<i64: 1, 32>}, {pipeline_mode = #tpu.pipeline_mode<synchronous>, transform_indices = @transform_12, window_bounds = array<i64: 1, 32>}, {transform_indices = @transform_13, window_bounds = array<i64: 1, 8, 32>}]} {
    %c0 = arith.constant 0 : index
    %c0_0 = arith.constant 0 : index
    %c0_1 = arith.constant 0 : index
    %0 = vector.load %arg1[%c0, %c0_0, %c0_1] : memref<1x8x32xbf16, #tpu.memory_space<vmem>>, vector<1x8x32xbf16>
    %1 = vector.shape_cast %0 : vector<1x8x32xbf16> to vector<8x32xbf16>
    %c0_2 = arith.constant 0 : index
    %c0_3 = arith.constant 0 : index
    %2 = vector.load %arg2[%c0_2, %c0_3] : memref<32x96xbf16, #tpu.memory_space<vmem>>, vector<32x96xbf16>
    %cst = arith.constant dense<0.000000e+00> : vector<8x96xf32>
    %3 = tpu.matmul %1, %2, %cst {dimension_numbers = #tpu.dot_dimension_numbers<[1], [0], [0], [1], [0, 0, 1, 1], [], []>} : vector<8x32xbf16>, vector<32x96xbf16>, vector<8x96xf32> -> vector<8x96xf32>
    %c0_4 = arith.constant 0 : index
    %c0_5 = arith.constant 0 : index
    %4 = vector.load %arg3[%c0_4, %c0_5] : memref<1x96xf32, #tpu.memory_space<vmem>>, vector<1x96xf32>
    %5 = vector.shape_cast %4 : vector<1x96xf32> to vector<96xf32>
    %6 = vector.shape_cast %5 : vector<96xf32> to vector<1x96xf32>
    %7 = vector.broadcast %6 : vector<1x96xf32> to vector<8x96xf32>
    %8 = arith.addf %3, %7 : vector<8x96xf32>
    %9 = vector.extract_strided_slice %8 {offsets = [0, 0], sizes = [8, 8], strides = [1, 1]} : vector<8x96xf32> to vector<8x8xf32>
    %10 = arith.truncf %9 : vector<8x8xf32> to vector<8x8xbf16>
    %11 = vector.extract_strided_slice %8 {offsets = [0, 8], sizes = [8, 8], strides = [1, 1]} : vector<8x96xf32> to vector<8x8xf32>
    %12 = arith.truncf %11 : vector<8x8xf32> to vector<8x8xbf16>
    %13 = vector.extract_strided_slice %8 {offsets = [0, 16], sizes = [8, 8], strides = [1, 1]} : vector<8x96xf32> to vector<8x8xf32>
    %14 = arith.truncf %13 : vector<8x8xf32> to vector<8x8xbf16>
    %15 = vector.extract_strided_slice %8 {offsets = [0, 24], sizes = [8, 8], strides = [1, 1]} : vector<8x96xf32> to vector<8x8xf32>
    %16 = arith.truncf %15 : vector<8x8xf32> to vector<8x8xbf16>
    %17 = vector.shape_cast %10 : vector<8x8xbf16> to vector<1x8x8xbf16>
    %18 = vector.shape_cast %12 : vector<8x8xbf16> to vector<1x8x8xbf16>
    %19 = vector.shape_cast %14 : vector<8x8xbf16> to vector<1x8x8xbf16>
    %20 = vector.shape_cast %16 : vector<8x8xbf16> to vector<1x8x8xbf16>
    %21 = tpu.concatenate %17, %18, %19, %20 in 0 : vector<1x8x8xbf16>, vector<1x8x8xbf16>, vector<1x8x8xbf16>, vector<1x8x8xbf16> -> vector<4x8x8xbf16>
    %22 = vector.extract_strided_slice %8 {offsets = [0, 32], sizes = [8, 8], strides = [1, 1]} : vector<8x96xf32> to vector<8x8xf32>
    %23 = arith.truncf %22 : vector<8x8xf32> to vector<8x8xbf16>
    %24 = vector.extract_strided_slice %8 {offsets = [0, 40], sizes = [8, 8], strides = [1, 1]} : vector<8x96xf32> to vector<8x8xf32>
    %25 = arith.truncf %24 : vector<8x8xf32> to vector<8x8xbf16>
    %26 = vector.extract_strided_slice %8 {offsets = [0, 48], sizes = [8, 8], strides = [1, 1]} : vector<8x96xf32> to vector<8x8xf32>
    %27 = arith.truncf %26 : vector<8x8xf32> to vector<8x8xbf16>
    %28 = vector.extract_strided_slice %8 {offsets = [0, 56], sizes = [8, 8], strides = [1, 1]} : vector<8x96xf32> to vector<8x8xf32>
    %29 = arith.truncf %28 : vector<8x8xf32> to vector<8x8xbf16>
    %30 = vector.shape_cast %23 : vector<8x8xbf16> to vector<1x8x8xbf16>
    %31 = vector.shape_cast %25 : vector<8x8xbf16> to vector<1x8x8xbf16>
    %32 = vector.shape_cast %27 : vector<8x8xbf16> to vector<1x8x8xbf16>
    %33 = vector.shape_cast %29 : vector<8x8xbf16> to vector<1x8x8xbf16>
    %34 = tpu.concatenate %30, %31, %32, %33 in 0 : vector<1x8x8xbf16>, vector<1x8x8xbf16>, vector<1x8x8xbf16>, vector<1x8x8xbf16> -> vector<4x8x8xbf16>
    %35 = vector.extract_strided_slice %8 {offsets = [0, 64], sizes = [8, 8], strides = [1, 1]} : vector<8x96xf32> to vector<8x8xf32>
    %36 = arith.truncf %35 : vector<8x8xf32> to vector<8x8xbf16>
    %37 = vector.extract_strided_slice %8 {offsets = [0, 72], sizes = [8, 8], strides = [1, 1]} : vector<8x96xf32> to vector<8x8xf32>
    %38 = arith.truncf %37 : vector<8x8xf32> to vector<8x8xbf16>
    %39 = vector.extract_strided_slice %8 {offsets = [0, 80], sizes = [8, 8], strides = [1, 1]} : vector<8x96xf32> to vector<8x8xf32>
    %40 = arith.truncf %39 : vector<8x8xf32> to vector<8x8xbf16>
    %41 = vector.extract_strided_slice %8 {offsets = [0, 88], sizes = [8, 8], strides = [1, 1]} : vector<8x96xf32> to vector<8x8xf32>
    %42 = arith.truncf %41 : vector<8x8xf32> to vector<8x8xbf16>
    %43 = vector.shape_cast %36 : vector<8x8xbf16> to vector<1x8x8xbf16>
    %44 = vector.shape_cast %38 : vector<8x8xbf16> to vector<1x8x8xbf16>
    %45 = vector.shape_cast %40 : vector<8x8xbf16> to vector<1x8x8xbf16>
    %46 = vector.shape_cast %42 : vector<8x8xbf16> to vector<1x8x8xbf16>
    %47 = tpu.concatenate %43, %44, %45, %46 in 0 : vector<1x8x8xbf16>, vector<1x8x8xbf16>, vector<1x8x8xbf16>, vector<1x8x8xbf16> -> vector<4x8x8xbf16>
    %cst_6 = arith.constant dense<0.000000e+00> : vector<4x8x8xf32>
    %48 = tpu.matmul %21, %34, %cst_6 {dimension_numbers = #tpu.dot_dimension_numbers<[2], [2], [1], [1], [0, 0, 0, 1, 1, 1], [0], [0]>} : vector<4x8x8xbf16>, vector<4x8x8xbf16>, vector<4x8x8xf32> -> vector<4x8x8xf32>
    %cst_7 = arith.constant dense<0xFF800000> : vector<4x8xf32>
    %49 = vector.multi_reduction <maximumf>, %48, %cst_7 [2] : vector<4x8x8xf32> to vector<4x8xf32>
    %50 = vector.shape_cast %49 : vector<4x8xf32> to vector<4x8x1xf32>
    %51 = vector.broadcast %50 : vector<4x8x1xf32> to vector<4x8x8xf32>
    %52 = arith.subf %48, %51 : vector<4x8x8xf32>
    %53 = math.exp %52 : vector<4x8x8xf32>
    %cst_8 = arith.constant dense<0.000000e+00> : vector<4x8xf32>
    %54 = vector.multi_reduction <add>, %53, %cst_8 [2] : vector<4x8x8xf32> to vector<4x8xf32>
    %55 = vector.shape_cast %54 : vector<4x8xf32> to vector<4x8x1xf32>
    %56 = tpu.reciprocal %55 {approx = true} : vector<4x8x1xf32> -> vector<4x8x1xf32>
    %57 = vector.broadcast %56 : vector<4x8x1xf32> to vector<4x8x8xf32>
    %58 = arith.mulf %53, %57 : vector<4x8x8xf32>
    %59 = arith.truncf %58 : vector<4x8x8xf32> to vector<4x8x8xbf16>
    %cst_9 = arith.constant dense<0.000000e+00> : vector<4x8x8xf32>
    %60 = tpu.matmul %59, %47, %cst_9 {dimension_numbers = #tpu.dot_dimension_numbers<[2], [1], [1], [2], [0, 0, 0, 1, 1, 2], [0], [0]>} : vector<4x8x8xbf16>, vector<4x8x8xbf16>, vector<4x8x8xf32> -> vector<4x8x8xf32>
    %61 = vector.extract_strided_slice %60 {offsets = [0, 0, 0], sizes = [1, 8, 8], strides = [1, 1, 1]} : vector<4x8x8xf32> to vector<1x8x8xf32>
    %62 = vector.shape_cast %61 : vector<1x8x8xf32> to vector<8x8xf32>
    %63 = arith.truncf %62 : vector<8x8xf32> to vector<8x8xbf16>
    %64 = vector.extract_strided_slice %60 {offsets = [1, 0, 0], sizes = [1, 8, 8], strides = [1, 1, 1]} : vector<4x8x8xf32> to vector<1x8x8xf32>
    %65 = vector.shape_cast %64 : vector<1x8x8xf32> to vector<8x8xf32>
    %66 = arith.truncf %65 : vector<8x8xf32> to vector<8x8xbf16>
    %67 = vector.extract_strided_slice %60 {offsets = [2, 0, 0], sizes = [1, 8, 8], strides = [1, 1, 1]} : vector<4x8x8xf32> to vector<1x8x8xf32>
    %68 = vector.shape_cast %67 : vector<1x8x8xf32> to vector<8x8xf32>
    %69 = arith.truncf %68 : vector<8x8xf32> to vector<8x8xbf16>
    %70 = vector.extract_strided_slice %60 {offsets = [3, 0, 0], sizes = [1, 8, 8], strides = [1, 1, 1]} : vector<4x8x8xf32> to vector<1x8x8xf32>
    %71 = vector.shape_cast %70 : vector<1x8x8xf32> to vector<8x8xf32>
    %72 = arith.truncf %71 : vector<8x8xf32> to vector<8x8xbf16>
    %73 = tpu.concatenate %63, %66, %69, %72 in 1 : vector<8x8xbf16>, vector<8x8xbf16>, vector<8x8xbf16>, vector<8x8xbf16> -> vector<8x32xbf16>
    %c0_10 = arith.constant 0 : index
    %c0_11 = arith.constant 0 : index
    %74 = vector.load %arg4[%c0_10, %c0_11] : memref<32x32xbf16, #tpu.memory_space<vmem>>, vector<32x32xbf16>
    %cst_12 = arith.constant dense<0.000000e+00> : vector<8x32xf32>
    %75 = tpu.matmul %73, %74, %cst_12 {dimension_numbers = #tpu.dot_dimension_numbers<[1], [0], [0], [1], [0, 0, 1, 1], [], []>} : vector<8x32xbf16>, vector<32x32xbf16>, vector<8x32xf32> -> vector<8x32xf32>
    %c0_13 = arith.constant 0 : index
    %c0_14 = arith.constant 0 : index
    %76 = vector.load %arg5[%c0_13, %c0_14] : memref<1x32xf32, #tpu.memory_space<vmem>>, vector<1x32xf32>
    %77 = vector.shape_cast %76 : vector<1x32xf32> to vector<32xf32>
    %78 = vector.shape_cast %77 : vector<32xf32> to vector<1x32xf32>
    %79 = vector.broadcast %78 : vector<1x32xf32> to vector<8x32xf32>
    %80 = arith.addf %75, %79 : vector<8x32xf32>
    %81 = arith.extf %1 : vector<8x32xbf16> to vector<8x32xf32>
    %82 = arith.addf %81, %80 : vector<8x32xf32>
    %cst_15 = arith.constant dense<0.000000e+00> : vector<8xf32>
    %83 = vector.multi_reduction <add>, %82, %cst_15 [1] : vector<8x32xf32> to vector<8xf32>
    %84 = vector.shape_cast %83 : vector<8xf32> to vector<8x1xf32>
    %cst_16 = arith.constant 3.200000e+01 : f32
    %85 = vector.broadcast %cst_16 : f32 to vector<8x1xf32>
    %86 = arith.divf %84, %85 : vector<8x1xf32>
    %87 = vector.broadcast %86 : vector<8x1xf32> to vector<8x32xf32>
    %88 = arith.subf %82, %87 : vector<8x32xf32>
    %89 = arith.mulf %88, %88 : vector<8x32xf32>
    %cst_17 = arith.constant dense<0.000000e+00> : vector<8xf32>
    %90 = vector.multi_reduction <add>, %89, %cst_17 [1] : vector<8x32xf32> to vector<8xf32>
    %91 = vector.shape_cast %90 : vector<8xf32> to vector<8x1xf32>
    %cst_18 = arith.constant 3.200000e+01 : f32
    %92 = vector.broadcast %cst_18 : f32 to vector<8x1xf32>
    %93 = arith.divf %91, %92 : vector<8x1xf32>
    %94 = vector.broadcast %86 : vector<8x1xf32> to vector<8x32xf32>
    %95 = arith.subf %82, %94 : vector<8x32xf32>
    %cst_19 = arith.constant 9.99999974E-6 : f32
    %96 = vector.broadcast %cst_19 : f32 to vector<8x1xf32>
    %97 = arith.addf %93, %96 : vector<8x1xf32>
    %98 = math.rsqrt %97 : vector<8x1xf32>
    %99 = vector.broadcast %98 : vector<8x1xf32> to vector<8x32xf32>
    %100 = arith.mulf %95, %99 : vector<8x32xf32>
    %c0_20 = arith.constant 0 : index
    %c0_21 = arith.constant 0 : index
    %101 = vector.load %arg6[%c0_20, %c0_21] : memref<1x32xf32, #tpu.memory_space<vmem>>, vector<1x32xf32>
    %102 = vector.shape_cast %101 : vector<1x32xf32> to vector<32xf32>
    %103 = vector.shape_cast %102 : vector<32xf32> to vector<1x32xf32>
    %104 = vector.broadcast %103 : vector<1x32xf32> to vector<8x32xf32>
    %105 = arith.mulf %100, %104 : vector<8x32xf32>
    %c0_22 = arith.constant 0 : index
    %c0_23 = arith.constant 0 : index
    %106 = vector.load %arg7[%c0_22, %c0_23] : memref<1x32xf32, #tpu.memory_space<vmem>>, vector<1x32xf32>
    %107 = vector.shape_cast %106 : vector<1x32xf32> to vector<32xf32>
    %108 = vector.shape_cast %107 : vector<32xf32> to vector<1x32xf32>
    %109 = vector.broadcast %108 : vector<1x32xf32> to vector<8x32xf32>
    %110 = arith.addf %105, %109 : vector<8x32xf32>
    %111 = arith.truncf %110 : vector<8x32xf32> to vector<8x32xbf16>
    %c0_24 = arith.constant 0 : index
    %c0_25 = arith.constant 0 : index
    %112 = vector.load %arg8[%c0_24, %c0_25] : memref<32x32xbf16, #tpu.memory_space<vmem>>, vector<32x32xbf16>
    %cst_26 = arith.constant dense<0.000000e+00> : vector<8x32xf32>
    %113 = tpu.matmul %111, %112, %cst_26 {dimension_numbers = #tpu.dot_dimension_numbers<[1], [0], [0], [1], [0, 0, 1, 1], [], []>} : vector<8x32xbf16>, vector<32x32xbf16>, vector<8x32xf32> -> vector<8x32xf32>
    %c0_27 = arith.constant 0 : index
    %c0_28 = arith.constant 0 : index
    %114 = vector.load %arg9[%c0_27, %c0_28] : memref<1x32xf32, #tpu.memory_space<vmem>>, vector<1x32xf32>
    %115 = vector.shape_cast %114 : vector<1x32xf32> to vector<32xf32>
    %116 = vector.shape_cast %115 : vector<32xf32> to vector<1x32xf32>
    %117 = vector.broadcast %116 : vector<1x32xf32> to vector<8x32xf32>
    %118 = arith.addf %113, %117 : vector<8x32xf32>
    %cst_29 = arith.constant 0.000000e+00 : f32
    %119 = vector.broadcast %cst_29 : f32 to vector<8x32xf32>
    %120 = arith.maximumf %118, %119 : vector<8x32xf32>
    %121 = arith.truncf %120 : vector<8x32xf32> to vector<8x32xbf16>
    %c0_30 = arith.constant 0 : index
    %c0_31 = arith.constant 0 : index
    %122 = vector.load %arg10[%c0_30, %c0_31] : memref<32x32xbf16, #tpu.memory_space<vmem>>, vector<32x32xbf16>
    %cst_32 = arith.constant dense<0.000000e+00> : vector<8x32xf32>
    %123 = tpu.matmul %121, %122, %cst_32 {dimension_numbers = #tpu.dot_dimension_numbers<[1], [0], [0], [1], [0, 0, 1, 1], [], []>} : vector<8x32xbf16>, vector<32x32xbf16>, vector<8x32xf32> -> vector<8x32xf32>
    %124 = arith.addf %120, %123 : vector<8x32xf32>
    %c0_33 = arith.constant 0 : index
    %c0_34 = arith.constant 0 : index
    %125 = vector.load %arg11[%c0_33, %c0_34] : memref<1x32xf32, #tpu.memory_space<vmem>>, vector<1x32xf32>
    %126 = vector.shape_cast %125 : vector<1x32xf32> to vector<32xf32>
    %127 = vector.shape_cast %126 : vector<32xf32> to vector<1x32xf32>
    %128 = vector.broadcast %127 : vector<1x32xf32> to vector<8x32xf32>
    %129 = arith.addf %124, %128 : vector<8x32xf32>
    %cst_35 = arith.constant dense<0.000000e+00> : vector<8xf32>
    %130 = vector.multi_reduction <add>, %129, %cst_35 [1] : vector<8x32xf32> to vector<8xf32>
    %131 = vector.shape_cast %130 : vector<8xf32> to vector<8x1xf32>
    %cst_36 = arith.constant 3.200000e+01 : f32
    %132 = vector.broadcast %cst_36 : f32 to vector<8x1xf32>
    %133 = arith.divf %131, %132 : vector<8x1xf32>
    %134 = vector.broadcast %133 : vector<8x1xf32> to vector<8x32xf32>
    %135 = arith.subf %129, %134 : vector<8x32xf32>
    %136 = arith.mulf %135, %135 : vector<8x32xf32>
    %cst_37 = arith.constant dense<0.000000e+00> : vector<8xf32>
    %137 = vector.multi_reduction <add>, %136, %cst_37 [1] : vector<8x32xf32> to vector<8xf32>
    %138 = vector.shape_cast %137 : vector<8xf32> to vector<8x1xf32>
    %cst_38 = arith.constant 3.200000e+01 : f32
    %139 = vector.broadcast %cst_38 : f32 to vector<8x1xf32>
    %140 = arith.divf %138, %139 : vector<8x1xf32>
    %141 = vector.broadcast %133 : vector<8x1xf32> to vector<8x32xf32>
    %142 = arith.subf %129, %141 : vector<8x32xf32>
    %cst_39 = arith.constant 9.99999974E-6 : f32
    %143 = vector.broadcast %cst_39 : f32 to vector<8x1xf32>
    %144 = arith.addf %140, %143 : vector<8x1xf32>
    %145 = math.rsqrt %144 : vector<8x1xf32>
    %146 = vector.broadcast %145 : vector<8x1xf32> to vector<8x32xf32>
    %147 = arith.mulf %142, %146 : vector<8x32xf32>
    %c0_40 = arith.constant 0 : index
    %c0_41 = arith.constant 0 : index
    %148 = vector.load %arg12[%c0_40, %c0_41] : memref<1x32xf32, #tpu.memory_space<vmem>>, vector<1x32xf32>
    %149 = vector.shape_cast %148 : vector<1x32xf32> to vector<32xf32>
    %150 = vector.shape_cast %149 : vector<32xf32> to vector<1x32xf32>
    %151 = vector.broadcast %150 : vector<1x32xf32> to vector<8x32xf32>
    %152 = arith.mulf %147, %151 : vector<8x32xf32>
    %c0_42 = arith.constant 0 : index
    %c0_43 = arith.constant 0 : index
    %153 = vector.load %arg13[%c0_42, %c0_43] : memref<1x32xf32, #tpu.memory_space<vmem>>, vector<1x32xf32>
    %154 = vector.shape_cast %153 : vector<1x32xf32> to vector<32xf32>
    %155 = vector.shape_cast %154 : vector<32xf32> to vector<1x32xf32>
    %156 = vector.broadcast %155 : vector<1x32xf32> to vector<8x32xf32>
    %157 = arith.addf %152, %156 : vector<8x32xf32>
    %158 = arith.truncf %157 : vector<8x32xf32> to vector<8x32xbf16>
    %c0_44 = arith.constant 0 : index
    %c0_45 = arith.constant 0 : index
    %c0_46 = arith.constant 0 : index
    %159 = vector.load %arg14[%c0_44, %c0_45, %c0_46] : memref<1x8x32xbf16, #tpu.memory_space<vmem>>, vector<1x8x32xbf16>
    %160 = vector.shape_cast %159 : vector<1x8x32xbf16> to vector<8x32xbf16>
    %161 = vector.shape_cast %158 : vector<8x32xbf16> to vector<1x8x32xbf16>
    tpu.vector_store %arg14[%c0_44, %c0_45, %c0_46], %161 {strides = array<i32>} : memref<1x8x32xbf16, #tpu.memory_space<vmem>>, vector<1x8x32xbf16>,
    return
  }
  func.func @transform_0(%arg0: i32) -> (i32, i32, i32) {
    %c0_i32 = arith.constant 0 : i32
    %c0_i32_0 = arith.constant 0 : i32
    %c0_i32_1 = arith.constant 0 : i32
    return %arg0, %c0_i32, %c0_i32_0 : i32, i32, i32
  }
  func.func @transform_1(%arg0: i32) -> (i32, i32) {
    %c0_i32 = arith.constant 0 : i32
    %c0_i32_0 = arith.constant 0 : i32
    %c0_i32_1 = arith.constant 0 : i32
    return %c0_i32, %c0_i32_0 : i32, i32
  }
  func.func @transform_2(%arg0: i32) -> (i32, i32) {
    %c0_i32 = arith.constant 0 : i32
    %c0_i32_0 = arith.constant 0 : i32
    %c0_i32_1 = arith.constant 0 : i32
    return %c0_i32, %c0_i32_0 : i32, i32
  }
  func.func @transform_3(%arg0: i32) -> (i32, i32) {
    %c0_i32 = arith.constant 0 : i32
    %c0_i32_0 = arith.constant 0 : i32
    %c0_i32_1 = arith.constant 0 : i32
    return %c0_i32, %c0_i32_0 : i32, i32
  }
  func.func @transform_4(%arg0: i32) -> (i32, i32) {
    %c0_i32 = arith.constant 0 : i32
    %c0_i32_0 = arith.constant 0 : i32
    %c0_i32_1 = arith.constant 0 : i32
    return %c0_i32, %c0_i32_0 : i32, i32
  }
  func.func @transform_5(%arg0: i32) -> (i32, i32) {
    %c0_i32 = arith.constant 0 : i32
    %c0_i32_0 = arith.constant 0 : i32
    %c0_i32_1 = arith.constant 0 : i32
    return %c0_i32, %c0_i32_0 : i32, i32
  }
  func.func @transform_6(%arg0: i32) -> (i32, i32) {
    %c0_i32 = arith.constant 0 : i32
    %c0_i32_0 = arith.constant 0 : i32
    %c0_i32_1 = arith.constant 0 : i32
    return %c0_i32, %c0_i32_0 : i32, i32
  }
  func.func @transform_7(%arg0: i32) -> (i32, i32) {
    %c0_i32 = arith.constant 0 : i32
    %c0_i32_0 = arith.constant 0 : i32
    %c0_i32_1 = arith.constant 0 : i32
    return %c0_i32, %c0_i32_0 : i32, i32
  }
  func.func @transform_8(%arg0: i32) -> (i32, i32) {
    %c0_i32 = arith.constant 0 : i32
    %c0_i32_0 = arith.constant 0 : i32
    %c0_i32_1 = arith.constant 0 : i32
    return %c0_i32, %c0_i32_0 : i32, i32
  }
  func.func @transform_9(%arg0: i32) -> (i32, i32) {
    %c0_i32 = arith.constant 0 : i32
    %c0_i32_0 = arith.constant 0 : i32
    %c0_i32_1 = arith.constant 0 : i32
    return %c0_i32, %c0_i32_0 : i32, i32
  }
  func.func @transform_10(%arg0: i32) -> (i32, i32) {
    %c0_i32 = arith.constant 0 : i32
    %c0_i32_0 = arith.constant 0 : i32
    %c0_i32_1 = arith.constant 0 : i32
    return %c0_i32, %c0_i32_0 : i32, i32
  }
  func.func @transform_11(%arg0: i32) -> (i32, i32) {
    %c0_i32 = arith.constant 0 : i32
    %c0_i32_0 = arith.constant 0 : i32
    %c0_i32_1 = arith.constant 0 : i32
    return %c0_i32, %c0_i32_0 : i32, i32
  }
  func.func @transform_12(%arg0: i32) -> (i32, i32) {
    %c0_i32 = arith.constant 0 : i32
    %c0_i32_0 = arith.constant 0 : i32
    %c0_i32_1 = arith.constant 0 : i32
    return %c0_i32, %c0_i32_0 : i32, i32
  }
  func.func @transform_13(%arg0: i32) -> (i32, i32, i32) {
    %c0_i32 = arith.constant 0 : i32
    %c0_i32_0 = arith.constant 0 : i32
    %c0_i32_1 = arith.constant 0 : i32
    return %arg0, %c0_i32, %c0_i32_0 : i32, i32, i32
  }
}

module attributes {stable_mosaic.version = 11 : i64} {
  func.func @_decoder_layer_kernel(%arg0: i32, %arg1: memref<1x8x32xbf16, #tpu.memory_space<vmem>>, %arg2: memref<32x96xbf16, #tpu.memory_space<vmem>>, %arg3: memref<1x96xf32, #tpu.memory_space<vmem>>, %arg4: memref<32x32xbf16, #tpu.memory_space<vmem>>, %arg5: memref<1x32xf32, #tpu.memory_space<vmem>>, %arg6: memref<1x32xf32, #tpu.memory_space<vmem>>, %arg7: memref<1x32xf32, #tpu.memory_space<vmem>>, %arg8: memref<32x32xbf16, #tpu.memory_space<vmem>>, %arg9: memref<1x32xf32, #tpu.memory_space<vmem>>, %arg10: memref<32x32xbf16, #tpu.memory_space<vmem>>, %arg11: memref<1x32xf32, #tpu.memory_space<vmem>>, %arg12: memref<1x32xf32, #tpu.memory_space<vmem>>, %arg13: memref<1x32xf32, #tpu.memory_space<vmem>>, %arg14: memref<1x8x32xf32, #tpu.memory_space<vmem>>) attributes {dimension_semantics = [#tpu.dimension_semantics<parallel>], iteration_bounds = array<i64: 2>, scalar_prefetch = 0 : i64, scratch_operands = 0 : i64, tpu.core_type = #tpu.core_type<tc>, window_params = [{transform_indices = @transform_0, window_bounds = array<i64: 1, 8, 32>}, {pipeline_mode = #tpu.pipeline_mode<synchronous>, transform_indices = @transform_1, window_bounds = array<i64: 32, 96>}, {pipeline_mode = #tpu.pipeline_mode<synchronous>, transform_indices = @transform_2, window_bounds = array<i64: 1, 96>}, {pipeline_mode = #tpu.pipeline_mode<synchronous>, transform_indices = @transform_3, window_bounds = array<i64: 32, 32>}, {pipeline_mode = #tpu.pipeline_mode<synchronous>, transform_indices = @transform_4, window_bounds = array<i64: 1, 32>}, {pipeline_mode = #tpu.pipeline_mode<synchronous>, transform_indices = @transform_5, window_bounds = array<i64: 1, 32>}, {pipeline_mode = #tpu.pipeline_mode<synchronous>, transform_indices = @transform_6, window_bounds = array<i64: 1, 32>}, {pipeline_mode = #tpu.pipeline_mode<synchronous>, transform_indices = @transform_7, window_bounds = array<i64: 32, 32>}, {pipeline_mode = #tpu.pipeline_mode<synchronous>, transform_indices = @transform_8, window_bounds = array<i64: 1, 32>}, {pipeline_mode = #tpu.pipeline_mode<synchronous>, transform_indices = @transform_9, window_bounds = array<i64: 32, 32>}, {pipeline_mode = #tpu.pipeline_mode<synchronous>, transform_indices = @transform_10, window_bounds = array<i64: 1, 32>}, {pipeline_mode = #tpu.pipeline_mode<synchronous>, transform_indices = @transform_11, window_bounds = array<i64: 1, 32>}, {pipeline_mode = #tpu.pipeline_mode<synchronous>, transform_indices = @transform_12, window_bounds = array<i64: 1, 32>}, {transform_indices = @transform_13, window_bounds = array<i64: 1, 8, 32>}]} {
    %c0 = arith.constant 0 : index
    %c0_0 = arith.constant 0 : index
    %c0_1 = arith.constant 0 : index
    %0 = vector.load %arg1[%c0, %c0_0, %c0_1] : memref<1x8x32xbf16, #tpu.memory_space<vmem>>, vector<1x8x32xbf16>
    %1 = vector.shape_cast %0 : vector<1x8x32xbf16> to vector<8x32xbf16>
    %c0_2 = arith.constant 0 : index
    %c0_3 = arith.constant 0 : index
    %2 = vector.load %arg2[%c0_2, %c0_3] : memref<32x96xbf16, #tpu.memory_space<vmem>>, vector<32x96xbf16>
    %cst = arith.constant dense<0.000000e+00> : vector<8x96xf32>
    %3 = tpu.matmul %1, %2, %cst {dimension_numbers = #tpu.dot_dimension_numbers<[1], [0], [0], [1], [0, 0, 1, 1], [], []>} : vector<8x32xbf16>, vector<32x96xbf16>, vector<8x96xf32> -> vector<8x96xf32>
    %c0_4 = arith.constant 0 : index
    %c0_5 = arith.constant 0 : index
    %4 = vector.load %arg3[%c0_4, %c0_5] : memref<1x96xf32, #tpu.memory_space<vmem>>, vector<1x96xf32>
    %5 = vector.shape_cast %4 : vector<1x96xf32> to vector<96xf32>
    %6 = vector.shape_cast %5 : vector<96xf32> to vector<1x96xf32>
    %7 = vector.broadcast %6 : vector<1x96xf32> to vector<8x96xf32>
    %8 = arith.addf %3, %7 : vector<8x96xf32>
    %9 = vector.extract_strided_slice %8 {offsets = [0, 0], sizes = [8, 8], strides = [1, 1]} : vector<8x96xf32> to vector<8x8xf32>
    %10 = arith.truncf %9 : vector<8x8xf32> to vector<8x8xbf16>
    %11 = vector.extract_strided_slice %8 {offsets = [0, 8], sizes = [8, 8], strides = [1, 1]} : vector<8x96xf32> to vector<8x8xf32>
    %12 = arith.truncf %11 : vector<8x8xf32> to vector<8x8xbf16>
    %13 = vector.extract_strided_slice %8 {offsets = [0, 16], sizes = [8, 8], strides = [1, 1]} : vector<8x96xf32> to vector<8x8xf32>
    %14 = arith.truncf %13 : vector<8x8xf32> to vector<8x8xbf16>
    %15 = vector.extract_strided_slice %8 {offsets = [0, 24], sizes = [8, 8], strides = [1, 1]} : vector<8x96xf32> to vector<8x8xf32>
    %16 = arith.truncf %15 : vector<8x8xf32> to vector<8x8xbf16>
    %17 = vector.shape_cast %10 : vector<8x8xbf16> to vector<1x8x8xbf16>
    %18 = vector.shape_cast %12 : vector<8x8xbf16> to vector<1x8x8xbf16>
    %19 = vector.shape_cast %14 : vector<8x8xbf16> to vector<1x8x8xbf16>
    %20 = vector.shape_cast %16 : vector<8x8xbf16> to vector<1x8x8xbf16>
    %21 = tpu.concatenate %17, %18, %19, %20 in 0 : vector<1x8x8xbf16>, vector<1x8x8xbf16>, vector<1x8x8xbf16>, vector<1x8x8xbf16> -> vector<4x8x8xbf16>
    %22 = vector.extract_strided_slice %8 {offsets = [0, 32], sizes = [8, 8], strides = [1, 1]} : vector<8x96xf32> to vector<8x8xf32>
    %23 = arith.truncf %22 : vector<8x8xf32> to vector<8x8xbf16>
    %24 = vector.extract_strided_slice %8 {offsets = [0, 40], sizes = [8, 8], strides = [1, 1]} : vector<8x96xf32> to vector<8x8xf32>
    %25 = arith.truncf %24 : vector<8x8xf32> to vector<8x8xbf16>
    %26 = vector.extract_strided_slice %8 {offsets = [0, 48], sizes = [8, 8], strides = [1, 1]} : vector<8x96xf32> to vector<8x8xf32>
    %27 = arith.truncf %26 : vector<8x8xf32> to vector<8x8xbf16>
    %28 = vector.extract_strided_slice %8 {offsets = [0, 56], sizes = [8, 8], strides = [1, 1]} : vector<8x96xf32> to vector<8x8xf32>
    %29 = arith.truncf %28 : vector<8x8xf32> to vector<8x8xbf16>
    %30 = vector.shape_cast %23 : vector<8x8xbf16> to vector<1x8x8xbf16>
    %31 = vector.shape_cast %25 : vector<8x8xbf16> to vector<1x8x8xbf16>
    %32 = vector.shape_cast %27 : vector<8x8xbf16> to vector<1x8x8xbf16>
    %33 = vector.shape_cast %29 : vector<8x8xbf16> to vector<1x8x8xbf16>
    %34 = tpu.concatenate %30, %31, %32, %33 in 0 : vector<1x8x8xbf16>, vector<1x8x8xbf16>, vector<1x8x8xbf16>, vector<1x8x8xbf16> -> vector<4x8x8xbf16>
    %35 = vector.extract_strided_slice %8 {offsets = [0, 64], sizes = [8, 8], strides = [1, 1]} : vector<8x96xf32> to vector<8x8xf32>
    %36 = arith.truncf %35 : vector<8x8xf32> to vector<8x8xbf16>
    %37 = vector.extract_strided_slice %8 {offsets = [0, 72], sizes = [8, 8], strides = [1, 1]} : vector<8x96xf32> to vector<8x8xf32>
    %38 = arith.truncf %37 : vector<8x8xf32> to vector<8x8xbf16>
    %39 = vector.extract_strided_slice %8 {offsets = [0, 80], sizes = [8, 8], strides = [1, 1]} : vector<8x96xf32> to vector<8x8xf32>
    %40 = arith.truncf %39 : vector<8x8xf32> to vector<8x8xbf16>
    %41 = vector.extract_strided_slice %8 {offsets = [0, 88], sizes = [8, 8], strides = [1, 1]} : vector<8x96xf32> to vector<8x8xf32>
    %42 = arith.truncf %41 : vector<8x8xf32> to vector<8x8xbf16>
    %43 = vector.shape_cast %36 : vector<8x8xbf16> to vector<1x8x8xbf16>
    %44 = vector.shape_cast %38 : vector<8x8xbf16> to vector<1x8x8xbf16>
    %45 = vector.shape_cast %40 : vector<8x8xbf16> to vector<1x8x8xbf16>
    %46 = vector.shape_cast %42 : vector<8x8xbf16> to vector<1x8x8xbf16>
    %47 = tpu.concatenate %43, %44, %45, %46 in 0 : vector<1x8x8xbf16>, vector<1x8x8xbf16>, vector<1x8x8xbf16>, vector<1x8x8xbf16> -> vector<4x8x8xbf16>
    %cst_6 = arith.constant dense<0.000000e+00> : vector<4x8x8xf32>
    %48 = tpu.matmul %21, %34, %cst_6 {dimension_numbers = #tpu.dot_dimension_numbers<[2], [2], [1], [1], [0, 0, 0, 1, 1, 1], [0], [0]>} : vector<4x8x8xbf16>, vector<4x8x8xbf16>, vector<4x8x8xf32> -> vector<4x8x8xf32>
    %cst_7 = arith.constant dense<0xFF800000> : vector<4x8xf32>
    %49 = vector.multi_reduction <maximumf>, %48, %cst_7 [2] : vector<4x8x8xf32> to vector<4x8xf32>
    %50 = vector.shape_cast %49 : vector<4x8xf32> to vector<4x8x1xf32>
    %51 = vector.broadcast %50 : vector<4x8x1xf32> to vector<4x8x8xf32>
    %52 = arith.subf %48, %51 : vector<4x8x8xf32>
    %53 = math.exp %52 : vector<4x8x8xf32>
    %cst_8 = arith.constant dense<0.000000e+00> : vector<4x8xf32>
    %54 = vector.multi_reduction <add>, %53, %cst_8 [2] : vector<4x8x8xf32> to vector<4x8xf32>
    %55 = vector.shape_cast %54 : vector<4x8xf32> to vector<4x8x1xf32>
    %56 = tpu.reciprocal %55 {approx = true} : vector<4x8x1xf32> -> vector<4x8x1xf32>
    %57 = vector.broadcast %56 : vector<4x8x1xf32> to vector<4x8x8xf32>
    %58 = arith.mulf %53, %57 : vector<4x8x8xf32>
    %59 = arith.truncf %58 : vector<4x8x8xf32> to vector<4x8x8xbf16>
    %cst_9 = arith.constant dense<0.000000e+00> : vector<4x8x8xf32>
    %60 = tpu.matmul %59, %47, %cst_9 {dimension_numbers = #tpu.dot_dimension_numbers<[2], [1], [1], [2], [0, 0, 0, 1, 1, 2], [0], [0]>} : vector<4x8x8xbf16>, vector<4x8x8xbf16>, vector<4x8x8xf32> -> vector<4x8x8xf32>
    %61 = vector.extract_strided_slice %60 {offsets = [0, 0, 0], sizes = [1, 8, 8], strides = [1, 1, 1]} : vector<4x8x8xf32> to vector<1x8x8xf32>
    %62 = vector.shape_cast %61 : vector<1x8x8xf32> to vector<8x8xf32>
    %63 = arith.truncf %62 : vector<8x8xf32> to vector<8x8xbf16>
    %64 = vector.extract_strided_slice %60 {offsets = [1, 0, 0], sizes = [1, 8, 8], strides = [1, 1, 1]} : vector<4x8x8xf32> to vector<1x8x8xf32>
    %65 = vector.shape_cast %64 : vector<1x8x8xf32> to vector<8x8xf32>
    %66 = arith.truncf %65 : vector<8x8xf32> to vector<8x8xbf16>
    %67 = vector.extract_strided_slice %60 {offsets = [2, 0, 0], sizes = [1, 8, 8], strides = [1, 1, 1]} : vector<4x8x8xf32> to vector<1x8x8xf32>
    %68 = vector.shape_cast %67 : vector<1x8x8xf32> to vector<8x8xf32>
    %69 = arith.truncf %68 : vector<8x8xf32> to vector<8x8xbf16>
    %70 = vector.extract_strided_slice %60 {offsets = [3, 0, 0], sizes = [1, 8, 8], strides = [1, 1, 1]} : vector<4x8x8xf32> to vector<1x8x8xf32>
    %71 = vector.shape_cast %70 : vector<1x8x8xf32> to vector<8x8xf32>
    %72 = arith.truncf %71 : vector<8x8xf32> to vector<8x8xbf16>
    %73 = tpu.concatenate %63, %66, %69, %72 in 1 : vector<8x8xbf16>, vector<8x8xbf16>, vector<8x8xbf16>, vector<8x8xbf16> -> vector<8x32xbf16>
    %c0_10 = arith.constant 0 : index
    %c0_11 = arith.constant 0 : index
    %74 = vector.load %arg4[%c0_10, %c0_11] : memref<32x32xbf16, #tpu.memory_space<vmem>>, vector<32x32xbf16>
    %cst_12 = arith.constant dense<0.000000e+00> : vector<8x32xf32>
    %75 = tpu.matmul %73, %74, %cst_12 {dimension_numbers = #tpu.dot_dimension_numbers<[1], [0], [0], [1], [0, 0, 1, 1], [], []>} : vector<8x32xbf16>, vector<32x32xbf16>, vector<8x32xf32> -> vector<8x32xf32>
    %c0_13 = arith.constant 0 : index
    %c0_14 = arith.constant 0 : index
    %76 = vector.load %arg5[%c0_13, %c0_14] : memref<1x32xf32, #tpu.memory_space<vmem>>, vector<1x32xf32>
    %77 = vector.shape_cast %76 : vector<1x32xf32> to vector<32xf32>
    %78 = vector.shape_cast %77 : vector<32xf32> to vector<1x32xf32>
    %79 = vector.broadcast %78 : vector<1x32xf32> to vector<8x32xf32>
    %80 = arith.addf %75, %79 : vector<8x32xf32>
    %81 = arith.extf %1 : vector<8x32xbf16> to vector<8x32xf32>
    %82 = arith.addf %81, %80 : vector<8x32xf32>
    %cst_15 = arith.constant dense<0.000000e+00> : vector<8xf32>
    %83 = vector.multi_reduction <add>, %82, %cst_15 [1] : vector<8x32xf32> to vector<8xf32>
    %84 = vector.shape_cast %83 : vector<8xf32> to vector<8x1xf32>
    %cst_16 = arith.constant 3.200000e+01 : f32
    %85 = vector.broadcast %cst_16 : f32 to vector<8x1xf32>
    %86 = arith.divf %84, %85 : vector<8x1xf32>
    %87 = vector.broadcast %86 : vector<8x1xf32> to vector<8x32xf32>
    %88 = arith.subf %82, %87 : vector<8x32xf32>
    %89 = arith.mulf %88, %88 : vector<8x32xf32>
    %cst_17 = arith.constant dense<0.000000e+00> : vector<8xf32>
    %90 = vector.multi_reduction <add>, %89, %cst_17 [1] : vector<8x32xf32> to vector<8xf32>
    %91 = vector.shape_cast %90 : vector<8xf32> to vector<8x1xf32>
    %cst_18 = arith.constant 3.200000e+01 : f32
    %92 = vector.broadcast %cst_18 : f32 to vector<8x1xf32>
    %93 = arith.divf %91, %92 : vector<8x1xf32>
    %94 = vector.broadcast %86 : vector<8x1xf32> to vector<8x32xf32>
    %95 = arith.subf %82, %94 : vector<8x32xf32>
    %cst_19 = arith.constant 9.99999974E-6 : f32
    %96 = vector.broadcast %cst_19 : f32 to vector<8x1xf32>
    %97 = arith.addf %93, %96 : vector<8x1xf32>
    %98 = math.rsqrt %97 : vector<8x1xf32>
    %99 = vector.broadcast %98 : vector<8x1xf32> to vector<8x32xf32>
    %100 = arith.mulf %95, %99 : vector<8x32xf32>
    %c0_20 = arith.constant 0 : index
    %c0_21 = arith.constant 0 : index
    %101 = vector.load %arg6[%c0_20, %c0_21] : memref<1x32xf32, #tpu.memory_space<vmem>>, vector<1x32xf32>
    %102 = vector.shape_cast %101 : vector<1x32xf32> to vector<32xf32>
    %103 = vector.shape_cast %102 : vector<32xf32> to vector<1x32xf32>
    %104 = vector.broadcast %103 : vector<1x32xf32> to vector<8x32xf32>
    %105 = arith.mulf %100, %104 : vector<8x32xf32>
    %c0_22 = arith.constant 0 : index
    %c0_23 = arith.constant 0 : index
    %106 = vector.load %arg7[%c0_22, %c0_23] : memref<1x32xf32, #tpu.memory_space<vmem>>, vector<1x32xf32>
    %107 = vector.shape_cast %106 : vector<1x32xf32> to vector<32xf32>
    %108 = vector.shape_cast %107 : vector<32xf32> to vector<1x32xf32>
    %109 = vector.broadcast %108 : vector<1x32xf32> to vector<8x32xf32>
    %110 = arith.addf %105, %109 : vector<8x32xf32>
    %111 = arith.truncf %110 : vector<8x32xf32> to vector<8x32xbf16>
    %c0_24 = arith.constant 0 : index
    %c0_25 = arith.constant 0 : index
    %112 = vector.load %arg8[%c0_24, %c0_25] : memref<32x32xbf16, #tpu.memory_space<vmem>>, vector<32x32xbf16>
    %cst_26 = arith.constant dense<0.000000e+00> : vector<8x32xf32>
    %113 = tpu.matmul %111, %112, %cst_26 {dimension_numbers = #tpu.dot_dimension_numbers<[1], [0], [0], [1], [0, 0, 1, 1], [], []>} : vector<8x32xbf16>, vector<32x32xbf16>, vector<8x32xf32> -> vector<8x32xf32>
    %c0_27 = arith.constant 0 : index
    %c0_28 = arith.constant 0 : index
    %114 = vector.load %arg9[%c0_27, %c0_28] : memref<1x32xf32, #tpu.memory_space<vmem>>, vector<1x32xf32>
    %115 = vector.shape_cast %114 : vector<1x32xf32> to vector<32xf32>
    %116 = vector.shape_cast %115 : vector<32xf32> to vector<1x32xf32>
    %117 = vector.broadcast %116 : vector<1x32xf32> to vector<8x32xf32>
    %118 = arith.addf %113, %117 : vector<8x32xf32>
    %cst_29 = arith.constant 0.000000e+00 : f32
    %119 = vector.broadcast %cst_29 : f32 to vector<8x32xf32>
    %120 = arith.maximumf %118, %119 : vector<8x32xf32>
    %121 = arith.truncf %120 : vector<8x32xf32> to vector<8x32xbf16>
    %c0_30 = arith.constant 0 : index
    %c0_31 = arith.constant 0 : index
    %122 = vector.load %arg10[%c0_30, %c0_31] : memref<32x32xbf16, #tpu.memory_space<vmem>>, vector<32x32xbf16>
    %cst_32 = arith.constant dense<0.000000e+00> : vector<8x32xf32>
    %123 = tpu.matmul %121, %122, %cst_32 {dimension_numbers = #tpu.dot_dimension_numbers<[1], [0], [0], [1], [0, 0, 1, 1], [], []>} : vector<8x32xbf16>, vector<32x32xbf16>, vector<8x32xf32> -> vector<8x32xf32>
    %124 = arith.addf %120, %123 : vector<8x32xf32>
    %c0_33 = arith.constant 0 : index
    %c0_34 = arith.constant 0 : index
    %125 = vector.load %arg11[%c0_33, %c0_34] : memref<1x32xf32, #tpu.memory_space<vmem>>, vector<1x32xf32>
    %126 = vector.shape_cast %125 : vector<1x32xf32> to vector<32xf32>
    %127 = vector.shape_cast %126 : vector<32xf32> to vector<1x32xf32>
    %128 = vector.broadcast %127 : vector<1x32xf32> to vector<8x32xf32>
    %129 = arith.addf %124, %128 : vector<8x32xf32>
    %cst_35 = arith.constant dense<0.000000e+00> : vector<8xf32>
    %130 = vector.multi_reduction <add>, %129, %cst_35 [1] : vector<8x32xf32> to vector<8xf32>
    %131 = vector.shape_cast %130 : vector<8xf32> to vector<8x1xf32>
    %cst_36 = arith.constant 3.200000e+01 : f32
    %132 = vector.broadcast %cst_36 : f32 to vector<8x1xf32>
    %133 = arith.divf %131, %132 : vector<8x1xf32>
    %134 = vector.broadcast %133 : vector<8x1xf32> to vector<8x32xf32>
    %135 = arith.subf %129, %134 : vector<8x32xf32>
    %136 = arith.mulf %135, %135 : vector<8x32xf32>
    %cst_37 = arith.constant dense<0.000000e+00> : vector<8xf32>
    %137 = vector.multi_reduction <add>, %136, %cst_37 [1] : vector<8x32xf32> to vector<8xf32>
    %138 = vector.shape_cast %137 : vector<8xf32> to vector<8x1xf32>
    %cst_38 = arith.constant 3.200000e+01 : f32
    %139 = vector.broadcast %cst_38 : f32 to vector<8x1xf32>
    %140 = arith.divf %138, %139 : vector<8x1xf32>
    %141 = vector.broadcast %133 : vector<8x1xf32> to vector<8x32xf32>
    %142 = arith.subf %129, %141 : vector<8x32xf32>
    %cst_39 = arith.constant 9.99999974E-6 : f32
    %143 = vector.broadcast %cst_39 : f32 to vector<8x1xf32>
    %144 = arith.addf %140, %143 : vector<8x1xf32>
    %145 = math.rsqrt %144 : vector<8x1xf32>
    %146 = vector.broadcast %145 : vector<8x1xf32> to vector<8x32xf32>
    %147 = arith.mulf %142, %146 : vector<8x32xf32>
    %c0_40 = arith.constant 0 : index
    %c0_41 = arith.constant 0 : index
    %148 = vector.load %arg12[%c0_40, %c0_41] : memref<1x32xf32, #tpu.memory_space<vmem>>, vector<1x32xf32>
    %149 = vector.shape_cast %148 : vector<1x32xf32> to vector<32xf32>
    %150 = vector.shape_cast %149 : vector<32xf32> to vector<1x32xf32>
    %151 = vector.broadcast %150 : vector<1x32xf32> to vector<8x32xf32>
    %152 = arith.mulf %147, %151 : vector<8x32xf32>
    %c0_42 = arith.constant 0 : index
    %c0_43 = arith.constant 0 : index
    %153 = vector.load %arg13[%c0_42, %c0_43] : memref<1x32xf32, #tpu.memory_space<vmem>>, vector<1x32xf32>
    %154 = vector.shape_cast %153 : vector<1x32xf32> to vector<32xf32>
    %155 = vector.shape_cast %154 : vector<32xf32> to vector<1x32xf32>
    %156 = vector.broadcast %155 : vector<1x32xf32> to vector<8x32xf32>
    %157 = arith.addf %152, %156 : vector<8x32xf32>
    %c0_44 = arith.constant 0 : index
    %c0_45 = arith.constant 0 : index
    %c0_46 = arith.constant 0 : index
    %158 = vector.load %arg14[%c0_44, %c0_45, %c0_46] : memref<1x8x32xf32, #tpu.memory_space<vmem>>, vector<1x8x32xf32>
    %159 = vector.shape_cast %158 : vector<1x8x32xf32> to vector<8x32xf32>
    %160 = vector.shape_cast %157 : vector<8x32xf32> to vector<1x8x32xf32>
    tpu.vector_store %arg14[%c0_44, %c0_45, %c0_46], %160 {strides = array<i32>} : memref<1x8x32xf32, #tpu.memory_space<vmem>>, vector<1x8x32xf32>,
    return
  }
  func.func @transform_0(%arg0: i32) -> (i32, i32, i32) {
    %c0_i32 = arith.constant 0 : i32
    %c0_i32_0 = arith.constant 0 : i32
    %c0_i32_1 = arith.constant 0 : i32
    return %arg0, %c0_i32, %c0_i32_0 : i32, i32, i32
  }
  func.func @transform_1(%arg0: i32) -> (i32, i32) {
    %c0_i32 = arith.constant 0 : i32
    %c0_i32_0 = arith.constant 0 : i32
    %c0_i32_1 = arith.constant 0 : i32
    return %c0_i32, %c0_i32_0 : i32, i32
  }
  func.func @transform_2(%arg0: i32) -> (i32, i32) {
    %c0_i32 = arith.constant 0 : i32
    %c0_i32_0 = arith.constant 0 : i32
    %c0_i32_1 = arith.constant 0 : i32
    return %c0_i32, %c0_i32_0 : i32, i32
  }
  func.func @transform_3(%arg0: i32) -> (i32, i32) {
    %c0_i32 = arith.constant 0 : i32
    %c0_i32_0 = arith.constant 0 : i32
    %c0_i32_1 = arith.constant 0 : i32
    return %c0_i32, %c0_i32_0 : i32, i32
  }
  func.func @transform_4(%arg0: i32) -> (i32, i32) {
    %c0_i32 = arith.constant 0 : i32
    %c0_i32_0 = arith.constant 0 : i32
    %c0_i32_1 = arith.constant 0 : i32
    return %c0_i32, %c0_i32_0 : i32, i32
  }
  func.func @transform_5(%arg0: i32) -> (i32, i32) {
    %c0_i32 = arith.constant 0 : i32
    %c0_i32_0 = arith.constant 0 : i32
    %c0_i32_1 = arith.constant 0 : i32
    return %c0_i32, %c0_i32_0 : i32, i32
  }
  func.func @transform_6(%arg0: i32) -> (i32, i32) {
    %c0_i32 = arith.constant 0 : i32
    %c0_i32_0 = arith.constant 0 : i32
    %c0_i32_1 = arith.constant 0 : i32
    return %c0_i32, %c0_i32_0 : i32, i32
  }
  func.func @transform_7(%arg0: i32) -> (i32, i32) {
    %c0_i32 = arith.constant 0 : i32
    %c0_i32_0 = arith.constant 0 : i32
    %c0_i32_1 = arith.constant 0 : i32
    return %c0_i32, %c0_i32_0 : i32, i32
  }
  func.func @transform_8(%arg0: i32) -> (i32, i32) {
    %c0_i32 = arith.constant 0 : i32
    %c0_i32_0 = arith.constant 0 : i32
    %c0_i32_1 = arith.constant 0 : i32
    return %c0_i32, %c0_i32_0 : i32, i32
  }
  func.func @transform_9(%arg0: i32) -> (i32, i32) {
    %c0_i32 = arith.constant 0 : i32
    %c0_i32_0 = arith.constant 0 : i32
    %c0_i32_1 = arith.constant 0 : i32
    return %c0_i32, %c0_i32_0 : i32, i32
  }
  func.func @transform_10(%arg0: i32) -> (i32, i32) {
    %c0_i32 = arith.constant 0 : i32
    %c0_i32_0 = arith.constant 0 : i32
    %c0_i32_1 = arith.constant 0 : i32
    return %c0_i32, %c0_i32_0 : i32, i32
  }
  func.func @transform_11(%arg0: i32) -> (i32, i32) {
    %c0_i32 = arith.constant 0 : i32
    %c0_i32_0 = arith.constant 0 : i32
    %c0_i32_1 = arith.constant 0 : i32
    return %c0_i32, %c0_i32_0 : i32, i32
  }
  func.func @transform_12(%arg0: i32) -> (i32, i32) {
    %c0_i32 = arith.constant 0 : i32
    %c0_i32_0 = arith.constant 0 : i32
    %c0_i32_1 = arith.constant 0 : i32
    return %c0_i32, %c0_i32_0 : i32, i32
  }
  func.func @transform_13(%arg0: i32) -> (i32, i32, i32) {
    %c0_i32 = arith.constant 0 : i32
    %c0_i32_0 = arith.constant 0 : i32
    %c0_i32_1 = arith.constant 0 : i32
    return %arg0, %c0_i32, %c0_i32_0 : i32, i32, i32
  }
}

</mosaic_0001>

<llo_original>
// kernel: transformer_decoder_forward.2
$region0: #{transformer_decoder_forward.2}
  #allocation0 [shape = 'u32[]', space=smem, size = 0x4, offset = 0x4, fixed_abs, tag = 'smem constant byte address 0x4 - core index']
  #allocation1 [shape = 'u32[72,128]{1,0:T(1,128)}', space=vmem, size = 0x9000, scoped, tag = 'internal scratch']
  %s0 = inlined_call_operand.vmem [shape: bf16[2,8,32], index: 0, kind: input, shape index: {}]
  %s1 = inlined_call_operand.vmem [shape: bf16[32,96], index: 1, kind: input, shape index: {}]
  %s2 = inlined_call_operand.hbm [shape: f32[1,96], index: 2, kind: input, shape index: {}]
  %s3 = inlined_call_operand.vmem [shape: bf16[32,32], index: 3, kind: input, shape index: {}]
  %s4 = inlined_call_operand.hbm [shape: f32[1,32], index: 4, kind: input, shape index: {}]
  %s5 = inlined_call_operand.hbm [shape: f32[1,32], index: 5, kind: input, shape index: {}]
  %s6 = inlined_call_operand.hbm [shape: f32[1,32], index: 6, kind: input, shape index: {}]
  %s7 = inlined_call_operand.vmem [shape: bf16[32,32], index: 7, kind: input, shape index: {}]
  %s8 = inlined_call_operand.hbm [shape: f32[1,32], index: 8, kind: input, shape index: {}]
  %s9 = inlined_call_operand.vmem [shape: bf16[32,32], index: 9, kind: input, shape index: {}]
  %s10 = inlined_call_operand.hbm [shape: f32[1,32], index: 10, kind: input, shape index: {}]
  %s11 = inlined_call_operand.hbm [shape: f32[1,32], index: 11, kind: input, shape index: {}]
  %s12 = inlined_call_operand.hbm [shape: f32[1,32], index: 12, kind: input, shape index: {}]
  %s13 = inlined_call_operand.vmem [shape: bf16[2,8,32], index: 13, kind: output, shape index: {}]
  %s14 = sld [smem:[#allocation0]]
  $region117: #{transformer_decoder_forward.2} parent=0
    _
  %s16 = ssub.s32 1, %s14
  %s17 = scalar_select 0, %s16, %s14
  $region1: #{transformer_decoder_forward.2} parent=0
    #allocation2 [shape = 'u8[512]{0}', space=vmem, size = 0x400, scoped, tag = 'input window, operand 2, single buffered']
    #allocation3 [shape = 's32[2]{0}', space=sflag, size = 0x8, scoped, tag = 'scoped memory for transformer_decoder_forward.2']
    #allocation4 [shape = 'u8[512]{0}', space=vmem, size = 0x400, scoped, tag = 'input window, operand 4, single buffered']
    #allocation5 [shape = 's32[1]{0}', space=sflag, size = 0x4, scoped, tag = 'scoped memory for transformer_decoder_forward.2']
    #allocation6 [shape = 'u8[512]{0}', space=vmem, size = 0x400, scoped, tag = 'input window, operand 5, single buffered']
    #allocation7 [shape = 'u8[512]{0}', space=vmem, size = 0x400, scoped, tag = 'input window, operand 6, single buffered']
    #allocation8 [shape = 's32[1]{0}', space=sflag, size = 0x4, scoped, tag = 'scoped memory for transformer_decoder_forward.2']
    #allocation9 [shape = 'u8[512]{0}', space=vmem, size = 0x400, scoped, tag = 'input window, operand 8, single buffered']
    #allocation10 [shape = 'u8[512]{0}', space=vmem, size = 0x400, scoped, tag = 'input window, operand 10, single buffered']
    #allocation11 [shape = 's32[1]{0}', space=sflag, size = 0x4, scoped, tag = 'scoped memory for transformer_decoder_forward.2']
    #allocation12 [shape = 'u8[512]{0}', space=vmem, size = 0x400, scoped, tag = 'input window, operand 11, single buffered']
    #allocation13 [shape = 'u8[512]{0}', space=vmem, size = 0x400, scoped, tag = 'input window, operand 12, single buffered']
    #allocation14 [shape = 's32[1]{0}', space=sflag, size = 0x4, scoped, tag = 'scoped memory for transformer_decoder_forward.2']
    %18 = vsyncpa [#allocation3], 0
    %19 = vsyncpa [#allocation5], 0
    %20 = vsyncpa [#allocation8], 0
    %21 = vsyncpa [#allocation11], 0
    %22 = vsyncpa [#allocation14], 0
    loop: start=0, step=1, limit=4
    $region2: #{transformer_decoder_forward.2} parent=1 // loop_pre_header
      _
    $region3: #{transformer_decoder_forward.2} parent=1 // loop_header
      %s24 = sphi 0, %s28
      %p25 = scmp.ge.s32.totalorder %s24, 4
      %s34 = sphi 0, %s36
      %s37 = sphi 0, %s34
      %s38 = sphi 0, %s37
      %s54 = sphi 0, %s38
      %s58 = sphi 0, %s58
      %s60 = sphi 0, %s58
      %s61 = sphi 0, %s60
      %s75 = sphi 0, %s61
      %s79 = sphi 0, %s79
      %s81 = sphi 0, %s79
      %s82 = sphi 0, %s81
      %s96 = sphi 0, %s82
      %s100 = sphi 0, %s100
      %s102 = sphi 0, %s100
      %s103 = sphi 0, %s102
      %s117 = sphi 0, %s103
      %s121 = sphi 0, %s121
      %s123 = sphi 0, %s121
      %s124 = sphi 0, %s123
      %s138 = sphi 0, %s124
      %s142 = sphi 0, %s142
      %s144 = sphi 0, %s142
      %s145 = sphi 0, %s144
      %s159 = sphi 0, %s145
      %s163 = sphi 0, %s163
      %s165 = sphi 0, %s163
      %s166 = sphi 0, %s165
      %s180 = sphi 0, %s166
      %s184 = sphi 0, %s184
      %s186 = sphi 0, %s184
      %s187 = sphi 0, %s186
      %s201 = sphi 0, %s187
      %s205 = sphi 0, %s205
      %s207 = sphi 0, %s205
      %s208 = sphi 0, %s207
      %s222 = sphi 0, %s208
      %s226 = sphi 0, %s226
      %s228 = sphi 0, %s226
      %s229 = sphi 0, %s228
      %s243 = sphi 0, %s229
      %s247 = sphi 0, %s247
      %s249 = sphi 0, %s247
      %s250 = sphi 0, %s249
      %s264 = sphi 0, %s250
      %s268 = sphi 0, %s268
      %s270 = sphi 0, %s268
      %s271 = sphi 0, %s270
      %s285 = sphi 0, %s271
      %s289 = sphi 0, %s289
      %s291 = sphi 0, %s289
      %s292 = sphi 0, %s291
      %s306 = sphi 0, %s292
      %s312 = sphi 0, %s314
      %s315 = sphi 0, %s312
      %s316 = sphi 0, %s315
      %s332 = sphi 0, %s316
    $region4: #{transformer_decoder_forward.2} parent=1 // loop_header_branch
      %27 = sbr.rel (%p25) target = $region8
    $region5: #{transformer_decoder_forward.2} parent=1 // loop_body
      %s29 = ssub.s32 %s24, 1
      %s30 = ssub.s32 %s24, 2
      %s31 = sadd.s32 %s24, 1
      %s32 = ssub.s32 %s24, %s31
      %p33 = scmp.eq.s32.totalorder %s32, 0
      %s35 = sadd.s32 %s34, 1
      %s36 = scalar_select %p33, %s34, %s35
      %p39 = pneg %p33
      %p40 = scmp.eq.s32.totalorder %s24, 1
      %p41 = por %p39, %p40
      %p42 = scmp.ne.s32.totalorder %s34, %s37
      %p43 = scmp.eq.s32.totalorder %s24, 0
      %p44 = por %p42, %p43
      %p45 = scmp.ne.s32.totalorder %s34, %s37
      %p46 = scmp.eq.s32.totalorder %s29, 1
      %p47 = por %p45, %p46
      %p48 = scmp.ne.s32.totalorder %s37, %s38
      %p49 = scmp.eq.s32.totalorder %s29, 0
      %p50 = por %p48, %p49
      %p51 = scmp.ne.s32.totalorder %s37, %s38
      %p52 = scmp.eq.s32.totalorder %s30, 1
      %p53 = por %p51, %p52
      %p55 = scmp.ne.s32.totalorder %s38, %s54
      %p56 = scmp.eq.s32.totalorder %s30, 0
      %p57 = por %p55, %p56
      %s59 = sadd.s32 %s58, 1
      %p62 = scmp.eq.s32.totalorder %s24, 1
      %p63 = scmp.ne.s32.totalorder %s58, %s60
      %p64 = scmp.eq.s32.totalorder %s24, 0
      %p65 = por %p63, %p64
      %p66 = scmp.ne.s32.totalorder %s58, %s60
      %p67 = scmp.eq.s32.totalorder %s29, 1
      %p68 = por %p66, %p67
      %p69 = scmp.ne.s32.totalorder %s60, %s61
      %p70 = scmp.eq.s32.totalorder %s29, 0
      %p71 = por %p69, %p70
      %p72 = scmp.ne.s32.totalorder %s60, %s61
      %p73 = scmp.eq.s32.totalorder %s30, 1
      %p74 = por %p72, %p73
      %p76 = scmp.ne.s32.totalorder %s61, %s75
      %p77 = scmp.eq.s32.totalorder %s30, 0
      %p78 = por %p76, %p77
      %s80 = sadd.s32 %s79, 1
      %p83 = scmp.eq.s32.totalorder %s24, 1
      %p84 = scmp.ne.s32.totalorder %s79, %s81
      %p85 = scmp.eq.s32.totalorder %s24, 0
      %p86 = por %p84, %p85
      %p87 = scmp.ne.s32.totalorder %s79, %s81
      %p88 = scmp.eq.s32.totalorder %s29, 1
      %p89 = por %p87, %p88
      %p90 = scmp.ne.s32.totalorder %s81, %s82
      %p91 = scmp.eq.s32.totalorder %s29, 0
      %p92 = por %p90, %p91
      %p93 = scmp.ne.s32.totalorder %s81, %s82
      %p94 = scmp.eq.s32.totalorder %s30, 1
      %p95 = por %p93, %p94
      %p97 = scmp.ne.s32.totalorder %s82, %s96
      %p98 = scmp.eq.s32.totalorder %s30, 0
      %p99 = por %p97, %p98
      %s101 = sadd.s32 %s100, 1
      %p104 = scmp.eq.s32.totalorder %s24, 1
      %p105 = scmp.ne.s32.totalorder %s100, %s102
      %p106 = scmp.eq.s32.totalorder %s24, 0
      %p107 = por %p105, %p106
      %p108 = scmp.ne.s32.totalorder %s100, %s102
      %p109 = scmp.eq.s32.totalorder %s29, 1
      %p110 = por %p108, %p109
      %p111 = scmp.ne.s32.totalorder %s102, %s103
      %p112 = scmp.eq.s32.totalorder %s29, 0
      %p113 = por %p111, %p112
      %p114 = scmp.ne.s32.totalorder %s102, %s103
      %p115 = scmp.eq.s32.totalorder %s30, 1
      %p116 = por %p114, %p115
      %p118 = scmp.ne.s32.totalorder %s103, %s117
      %p119 = scmp.eq.s32.totalorder %s30, 0
      %p120 = por %p118, %p119
      %s122 = sadd.s32 %s121, 1
      %p125 = scmp.eq.s32.totalorder %s24, 1
      %p126 = scmp.ne.s32.totalorder %s121, %s123
      %p127 = scmp.eq.s32.totalorder %s24, 0
      %p128 = por %p126, %p127
      %p129 = scmp.ne.s32.totalorder %s121, %s123
      %p130 = scmp.eq.s32.totalorder %s29, 1
      %p131 = por %p129, %p130
      %p132 = scmp.ne.s32.totalorder %s123, %s124
      %p133 = scmp.eq.s32.totalorder %s29, 0
      %p134 = por %p132, %p133
      %p135 = scmp.ne.s32.totalorder %s123, %s124
      %p136 = scmp.eq.s32.totalorder %s30, 1
      %p137 = por %p135, %p136
      %p139 = scmp.ne.s32.totalorder %s124, %s138
      %p140 = scmp.eq.s32.totalorder %s30, 0
      %p141 = por %p139, %p140
      %s143 = sadd.s32 %s142, 1
      %p146 = scmp.eq.s32.totalorder %s24, 1
      %p147 = scmp.ne.s32.totalorder %s142, %s144
      %p148 = scmp.eq.s32.totalorder %s24, 0
      %p149 = por %p147, %p148
      %p150 = scmp.ne.s32.totalorder %s142, %s144
      %p151 = scmp.eq.s32.totalorder %s29, 1
      %p152 = por %p150, %p151
      %p153 = scmp.ne.s32.totalorder %s144, %s145
      %p154 = scmp.eq.s32.totalorder %s29, 0
      %p155 = por %p153, %p154
      %p156 = scmp.ne.s32.totalorder %s144, %s145
      %p157 = scmp.eq.s32.totalorder %s30, 1
      %p158 = por %p156, %p157
      %p160 = scmp.ne.s32.totalorder %s145, %s159
      %p161 = scmp.eq.s32.totalorder %s30, 0
      %p162 = por %p160, %p161
      %s164 = sadd.s32 %s163, 1
      %p167 = scmp.eq.s32.totalorder %s24, 1
      %p168 = scmp.ne.s32.totalorder %s163, %s165
      %p169 = scmp.eq.s32.totalorder %s24, 0
      %p170 = por %p168, %p169
      %p171 = scmp.ne.s32.totalorder %s163, %s165
      %p172 = scmp.eq.s32.totalorder %s29, 1
      %p173 = por %p171, %p172
      %p174 = scmp.ne.s32.totalorder %s165, %s166
      %p175 = scmp.eq.s32.totalorder %s29, 0
      %p176 = por %p174, %p175
      %p177 = scmp.ne.s32.totalorder %s165, %s166
      %p178 = scmp.eq.s32.totalorder %s30, 1
      %p179 = por %p177, %p178
      %p181 = scmp.ne.s32.totalorder %s166, %s180
      %p182 = scmp.eq.s32.totalorder %s30, 0
      %p183 = por %p181, %p182
      %s185 = sadd.s32 %s184, 1
      %p188 = scmp.eq.s32.totalorder %s24, 1
      %p189 = scmp.ne.s32.totalorder %s184, %s186
      %p190 = scmp.eq.s32.totalorder %s24, 0
      %p191 = por %p189, %p190
      %p192 = scmp.ne.s32.totalorder %s184, %s186
      %p193 = scmp.eq.s32.totalorder %s29, 1
      %p194 = por %p192, %p193
      %p195 = scmp.ne.s32.totalorder %s186, %s187
      %p196 = scmp.eq.s32.totalorder %s29, 0
      %p197 = por %p195, %p196
      %p198 = scmp.ne.s32.totalorder %s186, %s187
      %p199 = scmp.eq.s32.totalorder %s30, 1
      %p200 = por %p198, %p199
      %p202 = scmp.ne.s32.totalorder %s187, %s201
      %p203 = scmp.eq.s32.totalorder %s30, 0
      %p204 = por %p202, %p203
      %s206 = sadd.s32 %s205, 1
      %p209 = scmp.eq.s32.totalorder %s24, 1
      %p210 = scmp.ne.s32.totalorder %s205, %s207
      %p211 = scmp.eq.s32.totalorder %s24, 0
      %p212 = por %p210, %p211
      %p213 = scmp.ne.s32.totalorder %s205, %s207
      %p214 = scmp.eq.s32.totalorder %s29, 1
      %p215 = por %p213, %p214
      %p216 = scmp.ne.s32.totalorder %s207, %s208
      %p217 = scmp.eq.s32.totalorder %s29, 0
      %p218 = por %p216, %p217
      %p219 = scmp.ne.s32.totalorder %s207, %s208
      %p220 = scmp.eq.s32.totalorder %s30, 1
      %p221 = por %p219, %p220
      %p223 = scmp.ne.s32.totalorder %s208, %s222
      %p224 = scmp.eq.s32.totalorder %s30, 0
      %p225 = por %p223, %p224
      %s227 = sadd.s32 %s226, 1
      %p230 = scmp.eq.s32.totalorder %s24, 1
      %p231 = scmp.ne.s32.totalorder %s226, %s228
      %p232 = scmp.eq.s32.totalorder %s24, 0
      %p233 = por %p231, %p232
      %p234 = scmp.ne.s32.totalorder %s226, %s228
      %p235 = scmp.eq.s32.totalorder %s29, 1
      %p236 = por %p234, %p235
      %p237 = scmp.ne.s32.totalorder %s228, %s229
      %p238 = scmp.eq.s32.totalorder %s29, 0
      %p239 = por %p237, %p238
      %p240 = scmp.ne.s32.totalorder %s228, %s229
      %p241 = scmp.eq.s32.totalorder %s30, 1
      %p242 = por %p240, %p241
      %p244 = scmp.ne.s32.totalorder %s229, %s243
      %p245 = scmp.eq.s32.totalorder %s30, 0
      %p246 = por %p244, %p245
      %s248 = sadd.s32 %s247, 1
      %p251 = scmp.eq.s32.totalorder %s24, 1
      %p252 = scmp.ne.s32.totalorder %s247, %s249
      %p253 = scmp.eq.s32.totalorder %s24, 0
      %p254 = por %p252, %p253
      %p255 = scmp.ne.s32.totalorder %s247, %s249
      %p256 = scmp.eq.s32.totalorder %s29, 1
      %p257 = por %p255, %p256
      %p258 = scmp.ne.s32.totalorder %s249, %s250
      %p259 = scmp.eq.s32.totalorder %s29, 0
      %p260 = por %p258, %p259
      %p261 = scmp.ne.s32.totalorder %s249, %s250
      %p262 = scmp.eq.s32.totalorder %s30, 1
      %p263 = por %p261, %p262
      %p265 = scmp.ne.s32.totalorder %s250, %s264
      %p266 = scmp.eq.s32.totalorder %s30, 0
      %p267 = por %p265, %p266
      %s269 = sadd.s32 %s268, 1
      %p272 = scmp.eq.s32.totalorder %s24, 1
      %p273 = scmp.ne.s32.totalorder %s268, %s270
      %p274 = scmp.eq.s32.totalorder %s24, 0
      %p275 = por %p273, %p274
      %p276 = scmp.ne.s32.totalorder %s268, %s270
      %p277 = scmp.eq.s32.totalorder %s29, 1
      %p278 = por %p276, %p277
      %p279 = scmp.ne.s32.totalorder %s270, %s271
      %p280 = scmp.eq.s32.totalorder %s29, 0
      %p281 = por %p279, %p280
      %p282 = scmp.ne.s32.totalorder %s270, %s271
      %p283 = scmp.eq.s32.totalorder %s30, 1
      %p284 = por %p282, %p283
      %p286 = scmp.ne.s32.totalorder %s271, %s285
      %p287 = scmp.eq.s32.totalorder %s30, 0
      %p288 = por %p286, %p287
      %s290 = sadd.s32 %s289, 1
      %p293 = scmp.eq.s32.totalorder %s24, 1
      %p294 = scmp.ne.s32.totalorder %s289, %s291
      %p295 = scmp.eq.s32.totalorder %s24, 0
      %p296 = por %p294, %p295
      %p297 = scmp.ne.s32.totalorder %s289, %s291
      %p298 = scmp.eq.s32.totalorder %s29, 1
      %p299 = por %p297, %p298
      %p300 = scmp.ne.s32.totalorder %s291, %s292
      %p301 = scmp.eq.s32.totalorder %s29, 0
      %p302 = por %p300, %p301
      %p303 = scmp.ne.s32.totalorder %s291, %s292
      %p304 = scmp.eq.s32.totalorder %s30, 1
      %p305 = por %p303, %p304
      %p307 = scmp.ne.s32.totalorder %s292, %s306
      %p308 = scmp.eq.s32.totalorder %s30, 0
      %p309 = por %p307, %p308
      %s310 = ssub.s32 %s24, %s31
      %p311 = scmp.eq.s32.totalorder %s310, 0
      %s313 = sadd.s32 %s312, 1
      %s314 = scalar_select %p311, %s312, %s313
      %p317 = pneg %p311
      %p318 = scmp.eq.s32.totalorder %s24, 1
      %p319 = por %p317, %p318
      %p320 = scmp.ne.s32.totalorder %s312, %s315
      %p321 = scmp.eq.s32.totalorder %s24, 0
      %p322 = por %p320, %p321
      %p323 = scmp.ne.s32.totalorder %s312, %s315
      %p324 = scmp.eq.s32.totalorder %s29, 1
      %p325 = por %p323, %p324
      %p326 = scmp.ne.s32.totalorder %s315, %s316
      %p327 = scmp.eq.s32.totalorder %s29, 0
      %p328 = por %p326, %p327
      %p329 = scmp.ne.s32.totalorder %s315, %s316
      %p330 = scmp.eq.s32.totalorder %s30, 1
      %p331 = por %p329, %p330
      %p333 = scmp.ne.s32.totalorder %s316, %s332
      %p334 = scmp.eq.s32.totalorder %s30, 0
      %p335 = por %p333, %p334
      %p336 = scmp.le.s32.totalorder 1, %s24
      %p337 = scmp.lt.s32.totalorder %s24, 3
      %p338 = pnand %p336, %p337
      %p339 = pneg %p338
      // Predicated region
      $region9: #{transformer_decoder_forward.2} parent=5 // pred_check
        _
      $region10: #{transformer_decoder_forward.2} parent=5 // pred_check_branch
        %341 = sbr.rel (%p338) target = $region12
      $region11: #{transformer_decoder_forward.2} parent=5 // pred_region
        %s342 = ssub.s32 %s24, 1
        // Predicated region
        $region13: #{transformer_decoder_forward.2} parent=11 // pred_check
          %p343 = pneg %p71
        $region14: #{transformer_decoder_forward.2} parent=11 // pred_check_branch
          %345 = sbr.rel (%p343) target = $region16
        $region15: #{transformer_decoder_forward.2} parent=11 // pred_region
          _
        $region16: #{transformer_decoder_forward.2} parent=11 // pred_fallthru
          _
        // Predicated region
        $region17: #{transformer_decoder_forward.2} parent=11 // pred_check
          %p346 = pneg %p92
        $region18: #{transformer_decoder_forward.2} parent=11 // pred_check_branch
          %348 = sbr.rel (%p346) target = $region20
        $region19: #{transformer_decoder_forward.2} parent=11 // pred_region
          %350 = vsyncadd [#allocation3], 0
          %s352 = sshll.u32 %s2, 4
          %s353 = int_to_ptr.hbm [resolvable:$true] %s352
          %s354 = sshll.u32 [#allocation2], 4
          %s355 = int_to_ptr.vmem [resolvable:$true] %s354
          %357 = dma.hbm_to_vmem [thread:$0]  %s353, 16, %s355, [#allocation3]
        $region20: #{transformer_decoder_forward.2} parent=11 // pred_fallthru
          _
        // Predicated region
        $region21: #{transformer_decoder_forward.2} parent=11 // pred_check
          %p358 = pneg %p113
        $region22: #{transformer_decoder_forward.2} parent=11 // pred_check_branch
          %360 = sbr.rel (%p358) target = $region24
        $region23: #{transformer_decoder_forward.2} parent=11 // pred_region
          _
        $region24: #{transformer_decoder_forward.2} parent=11 // pred_fallthru
          _
        // Predicated region
        $region25: #{transformer_decoder_forward.2} parent=11 // pred_check
          %p361 = pneg %p134
        $region26: #{transformer_decoder_forward.2} parent=11 // pred_check_branch
          %363 = sbr.rel (%p361) target = $region28
        $region27: #{transformer_decoder_forward.2} parent=11 // pred_region
          %365 = vsyncadd [#allocation5], 0
          %s367 = sshll.u32 %s4, 4
          %s368 = int_to_ptr.hbm [resolvable:$true] %s367
          %s369 = sshll.u32 [#allocation4], 4
          %s370 = int_to_ptr.vmem [resolvable:$true] %s369
          %372 = dma.hbm_to_vmem [thread:$0]  %s368, 16, %s370, [#allocation5]
        $region28: #{transformer_decoder_forward.2} parent=11 // pred_fallthru
          _
        // Predicated region
        $region29: #{transformer_decoder_forward.2} parent=11 // pred_check
          %p373 = pneg %p155
        $region30: #{transformer_decoder_forward.2} parent=11 // pred_check_branch
          %375 = sbr.rel (%p373) target = $region32
        $region31: #{transformer_decoder_forward.2} parent=11 // pred_region
          %377 = vsyncadd [#allocation5], 0
          %s379 = sshll.u32 %s5, 4
          %s380 = int_to_ptr.hbm [resolvable:$true] %s379
          %s381 = sshll.u32 [#allocation6], 4
          %s382 = int_to_ptr.vmem [resolvable:$true] %s381
          %384 = dma.hbm_to_vmem [thread:$0]  %s380, 16, %s382, [#allocation5]
        $region32: #{transformer_decoder_forward.2} parent=11 // pred_fallthru
          _
        // Predicated region
        $region33: #{transformer_decoder_forward.2} parent=11 // pred_check
          %p385 = pneg %p176
        $region34: #{transformer_decoder_forward.2} parent=11 // pred_check_branch
          %387 = sbr.rel (%p385) target = $region36
        $region35: #{transformer_decoder_forward.2} parent=11 // pred_region
          %389 = vsyncadd [#allocation8], 0
          %s391 = sshll.u32 %s6, 4
          %s392 = int_to_ptr.hbm [resolvable:$true] %s391
          %s393 = sshll.u32 [#allocation7], 4
          %s394 = int_to_ptr.vmem [resolvable:$true] %s393
          %396 = dma.hbm_to_vmem [thread:$0]  %s392, 16, %s394, [#allocation8]
        $region36: #{transformer_decoder_forward.2} parent=11 // pred_fallthru
          _
        // Predicated region
        $region37: #{transformer_decoder_forward.2} parent=11 // pred_check
          %p397 = pneg %p197
        $region38: #{transformer_decoder_forward.2} parent=11 // pred_check_branch
          %399 = sbr.rel (%p397) target = $region40
        $region39: #{transformer_decoder_forward.2} parent=11 // pred_region
          _
        $region40: #{transformer_decoder_forward.2} parent=11 // pred_fallthru
          _
        // Predicated region
        $region41: #{transformer_decoder_forward.2} parent=11 // pred_check
          %p400 = pneg %p218
        $region42: #{transformer_decoder_forward.2} parent=11 // pred_check_branch
          %402 = sbr.rel (%p400) target = $region44
        $region43: #{transformer_decoder_forward.2} parent=11 // pred_region
          %404 = vsyncadd [#allocation8], 0
          %s406 = sshll.u32 %s8, 4
          %s407 = int_to_ptr.hbm [resolvable:$true] %s406
          %s408 = sshll.u32 [#allocation9], 4
          %s409 = int_to_ptr.vmem [resolvable:$true] %s408
          %411 = dma.hbm_to_vmem [thread:$0]  %s407, 16, %s409, [#allocation8]
        $region44: #{transformer_decoder_forward.2} parent=11 // pred_fallthru
          _
        // Predicated region
        $region45: #{transformer_decoder_forward.2} parent=11 // pred_check
          %p412 = pneg %p239
        $region46: #{transformer_decoder_forward.2} parent=11 // pred_check_branch
          %414 = sbr.rel (%p412) target = $region48
        $region47: #{transformer_decoder_forward.2} parent=11 // pred_region
          _
        $region48: #{transformer_decoder_forward.2} parent=11 // pred_fallthru
          _
        // Predicated region
        $region49: #{transformer_decoder_forward.2} parent=11 // pred_check
          %p415 = pneg %p260
        $region50: #{transformer_decoder_forward.2} parent=11 // pred_check_branch
          %417 = sbr.rel (%p415) target = $region52
        $region51: #{transformer_decoder_forward.2} parent=11 // pred_region
          %419 = vsyncadd [#allocation11], 0
          %s421 = sshll.u32 %s10, 4
          %s422 = int_to_ptr.hbm [resolvable:$true] %s421
          %s423 = sshll.u32 [#allocation10], 4
          %s424 = int_to_ptr.vmem [resolvable:$true] %s423
          %426 = dma.hbm_to_vmem [thread:$0]  %s422, 16, %s424, [#allocation11]
        $region52: #{transformer_decoder_forward.2} parent=11 // pred_fallthru
          _
        // Predicated region
        $region53: #{transformer_decoder_forward.2} parent=11 // pred_check
          %p427 = pneg %p281
        $region54: #{transformer_decoder_forward.2} parent=11 // pred_check_branch
          %429 = sbr.rel (%p427) target = $region56
        $region55: #{transformer_decoder_forward.2} parent=11 // pred_region
          %431 = vsyncadd [#allocation11], 0
          %s433 = sshll.u32 %s11, 4
          %s434 = int_to_ptr.hbm [resolvable:$true] %s433
          %s435 = sshll.u32 [#allocation12], 4
          %s436 = int_to_ptr.vmem [resolvable:$true] %s435
          %438 = dma.hbm_to_vmem [thread:$0]  %s434, 16, %s436, [#allocation11]
        $region56: #{transformer_decoder_forward.2} parent=11 // pred_fallthru
          _
        // Predicated region
        $region57: #{transformer_decoder_forward.2} parent=11 // pred_check
          %p439 = pneg %p302
        $region58: #{transformer_decoder_forward.2} parent=11 // pred_check_branch
          %441 = sbr.rel (%p439) target = $region60
        $region59: #{transformer_decoder_forward.2} parent=11 // pred_region
          %443 = vsyncadd [#allocation14], 0
          %s445 = sshll.u32 %s12, 4
          %s446 = int_to_ptr.hbm [resolvable:$true] %s445
          %s447 = sshll.u32 [#allocation13], 4
          %s448 = int_to_ptr.vmem [resolvable:$true] %s447
          %450 = dma.hbm_to_vmem [thread:$0]  %s446, 16, %s448, [#allocation14]
        $region60: #{transformer_decoder_forward.2} parent=11 // pred_fallthru
          _
      $region12: #{transformer_decoder_forward.2} parent=5 // pred_fallthru
        _
      %p451 = scmp.lt.s32.totalorder %s24, 2
      // Predicated region
      $region61: #{transformer_decoder_forward.2} parent=5 // pred_check
        %p452 = pneg %p451
      $region62: #{transformer_decoder_forward.2} parent=5 // pred_check_branch
        %454 = sbr.rel (%p452) target = $region64
      $region63: #{transformer_decoder_forward.2} parent=5 // pred_region
        // Predicated region
        $region65: #{transformer_decoder_forward.2} parent=63 // pred_check
          %p455 = pneg %p44
        $region66: #{transformer_decoder_forward.2} parent=63 // pred_check_branch
          %457 = sbr.rel (%p455) target = $region68
        $region67: #{transformer_decoder_forward.2} parent=63 // pred_region
          %p458 = scmp.lt.s32.totalorder %s24, 1
          %s459 = scalar_select %p458, %s24, 1
          %s460 = smul.addr %s459, 4
          %s461 = scalar_lea.vmem %s0, %s460
        $region68: #{transformer_decoder_forward.2} parent=63 // pred_fallthru
          _
      $region64: #{transformer_decoder_forward.2} parent=5 // pred_fallthru
        _
      %p462 = scmp.le.s32.totalorder 1, %s24
      %p463 = scmp.lt.s32.totalorder %s24, 3
      %p464 = pnand %p462, %p463
      %p465 = pneg %p464
      // Predicated region
      $region69: #{transformer_decoder_forward.2} parent=5 // pred_check
        _
      $region70: #{transformer_decoder_forward.2} parent=5 // pred_check_branch
        %467 = sbr.rel (%p464) target = $region72
      $region71: #{transformer_decoder_forward.2} parent=5 // pred_region
        %s468 = ssub.s32 %s24, 1
        // Predicated region
        $region73: #{transformer_decoder_forward.2} parent=71 // pred_check
          %p469 = pneg %p92
        $region74: #{transformer_decoder_forward.2} parent=71 // pred_check_branch
          %471 = sbr.rel (%p469) target = $region76
        $region75: #{transformer_decoder_forward.2} parent=71 // pred_region
          %473 = dma.done [#allocation3], 16
        $region76: #{transformer_decoder_forward.2} parent=71 // pred_fallthru
          _
        // Predicated region
        $region77: #{transformer_decoder_forward.2} parent=71 // pred_check
          %p474 = pneg %p134
        $region78: #{transformer_decoder_forward.2} parent=71 // pred_check_branch
          %476 = sbr.rel (%p474) target = $region80
        $region79: #{transformer_decoder_forward.2} parent=71 // pred_region
          %478 = dma.done [#allocation5], 16
        $region80: #{transformer_decoder_forward.2} parent=71 // pred_fallthru
          _
        // Predicated region
        $region81: #{transformer_decoder_forward.2} parent=71 // pred_check
          %p479 = pneg %p155
        $region82: #{transformer_decoder_forward.2} parent=71 // pred_check_branch
          %481 = sbr.rel (%p479) target = $region84
        $region83: #{transformer_decoder_forward.2} parent=71 // pred_region
          %483 = dma.done [#allocation5], 16
        $region84: #{transformer_decoder_forward.2} parent=71 // pred_fallthru
          _
        // Predicated region
        $region85: #{transformer_decoder_forward.2} parent=71 // pred_check
          %p484 = pneg %p176
        $region86: #{transformer_decoder_forward.2} parent=71 // pred_check_branch
          %486 = sbr.rel (%p484) target = $region88
        $region87: #{transformer_decoder_forward.2} parent=71 // pred_region
          %488 = dma.done [#allocation8], 16
        $region88: #{transformer_decoder_forward.2} parent=71 // pred_fallthru
          _
        // Predicated region
        $region89: #{transformer_decoder_forward.2} parent=71 // pred_check
          %p489 = pneg %p218
        $region90: #{transformer_decoder_forward.2} parent=71 // pred_check_branch
          %491 = sbr.rel (%p489) target = $region92
        $region91: #{transformer_decoder_forward.2} parent=71 // pred_region
          %493 = dma.done [#allocation8], 16
        $region92: #{transformer_decoder_forward.2} parent=71 // pred_fallthru
          _
        // Predicated region
        $region93: #{transformer_decoder_forward.2} parent=71 // pred_check
          %p494 = pneg %p260
        $region94: #{transformer_decoder_forward.2} parent=71 // pred_check_branch
          %496 = sbr.rel (%p494) target = $region96
        $region95: #{transformer_decoder_forward.2} parent=71 // pred_region
          %498 = dma.done [#allocation11], 16
        $region96: #{transformer_decoder_forward.2} parent=71 // pred_fallthru
          _
        // Predicated region
        $region97: #{transformer_decoder_forward.2} parent=71 // pred_check
          %p499 = pneg %p281
        $region98: #{transformer_decoder_forward.2} parent=71 // pred_check_branch
          %501 = sbr.rel (%p499) target = $region100
        $region99: #{transformer_decoder_forward.2} parent=71 // pred_region
          %503 = dma.done [#allocation11], 16
        $region100: #{transformer_decoder_forward.2} parent=71 // pred_fallthru
          _
        // Predicated region
        $region101: #{transformer_decoder_forward.2} parent=71 // pred_check
          %p504 = pneg %p302
        $region102: #{transformer_decoder_forward.2} parent=71 // pred_check_branch
          %506 = sbr.rel (%p504) target = $region104
        $region103: #{transformer_decoder_forward.2} parent=71 // pred_region
          %508 = dma.done [#allocation14], 16
        $region104: #{transformer_decoder_forward.2} parent=71 // pred_fallthru
          _
        %p509 = scmp.lt.s32.totalorder %s29, 1
        %s510 = scalar_select %p509, %s29, 1
        %s511 = smul.addr %s510, 4
        %s512 = scalar_lea.vmem %s0, %s511
        %p513 = pneg %p50
        %p514 = pneg %p47
        %p515 = pneg %p71
        %p516 = pneg %p68
        %p517 = pneg %p92
        %p518 = pneg %p89
        %p519 = pneg %p113
        %p520 = pneg %p110
        %p521 = pneg %p134
        %p522 = pneg %p131
        %p523 = pneg %p155
        %p524 = pneg %p152
        %p525 = pneg %p176
        %p526 = pneg %p173
        %p527 = pneg %p197
        %p528 = pneg %p194
        %p529 = pneg %p218
        %p530 = pneg %p215
        %p531 = pneg %p239
        %p532 = pneg %p236
        %p533 = pneg %p260
        %p534 = pneg %p257
        %p535 = pneg %p281
        %p536 = pneg %p278
        %p537 = pneg %p302
        %p538 = pneg %p299
        %p539 = pneg %p328
        %p540 = pneg %p325
        %p541 = scmp.lt.s32.totalorder %s29, 1
        %s542 = scalar_select %p541, %s29, 1
        %s543 = smul.addr %s542, 4
        %s544 = scalar_lea.vmem %s13, %s543
        %p545 = scmp.lt.s32.totalorder %s29, 1
        %s546 = scalar_select %p545, %s29, 1
        %s547 = smul.addr %s546, 4
        %s548 = scalar_lea.vmem %s0, %s547
        %p549 = scmp.lt.s32.totalorder %s29, 1
        %s550 = scalar_select %p549, %s29, 1
        %s551 = smul.addr %s550, 4
        %s552 = scalar_lea.vmem %s13, %s551
        %v554 = vld [vmem:[%s548] sm:$0xf]
        %v555 = vld [vmem:[%s1] sm:$0xf]
        %v556 = vld [vmem:[%s1 + $0x4] sm:$0xf]
        %v557 = vld [vmem:[%s1 + $0x8] sm:$0xf]
        %v558 = vld [vmem:[%s1 + $0xc] sm:$0xf]
        %v559 = vld [vmem:[#allocation2] sm:$0x1]
        %v561 = vperm.slane %v559, 0
        %v567 = vunpack.c.l.b16 %v555
        %v568 = vunpack.c.l.b16 %v556
        %v569 = vunpack.c.l.b16 %v557
        %v570 = vunpack.c.l.b16 %v558
        %v571 = vpack.c.b16 %v568, %v567
        %v572 = vpack.c.b16 %v570, %v569
        %vm575 = vcmask 261120
        %v577 = vsel %vm575, %v554, 0
        %579 = vmatpush.bf16.msra.mxu0 0
        %580 = vmatpush.bf16.msra.mxu0 0
        %581 = vmatpush.bf16.msra.mxu0 0
        %582 = vmatpush.bf16.msra.mxu0 0
        %583 = vmatpush.bf16.msra.mxu0 0
        %584 = vmatpush.bf16.msra.mxu0 0
        %585 = vmatpush.bf16.msra.mxu0 %v572
        %586 = vmatpush.bf16.msra.mxu0 %v571
        %587 = vmatmul.bf16.gmra.mxu0 %v577
        %v588 = vpop.f32.mrf.mxu0
        %v589 = vadd.f32 %v561, %v588
        %v590 = vpop.f32.mrf.mxu0
        %591 = vdwg.mxu0
        %v592 = vpack.c.bf16 %v589, %v589
        %594 = vrot.lane.b32.xlu0 %v592, 120
        %v595 = vpop.permute.xlu0 %594
        %596 = vrot.lane.b32.xlu0 %v592, 112
        %v597 = vpop.permute.xlu0 %596
        %598 = vrot.lane.b32.xlu0 %v592, 104
        %v599 = vpop.permute.xlu0 %598
        %v600 = vunpack.c.l.b16 %v592
        %v601 = vpack.c.b16 %v600, %v600
        %602 = vrot.lane.b32.xlu0 %v601, 96
        %v603 = vpop.permute.xlu0 %602
        %vm604 = vcmask 64512
        %v606 = vsel %vm604, %v592, 0
        %v609 = vsel %vm604, %v603, 0
        %611 = vmatpush.bf16.xpose.msra.mxu0 0
        %612 = vmatpush.bf16.xpose.msra.mxu0 0
        %613 = vmatpush.bf16.xpose.msra.mxu0 0
        %614 = vmatpush.bf16.xpose.msra.mxu0 0
        %615 = vmatpush.bf16.xpose.msra.mxu0 0
        %616 = vmatpush.bf16.xpose.msra.mxu0 0
        %617 = vmatpush.bf16.xpose.msra.mxu0 0
        %618 = vmatpush.bf16.xpose.msra.mxu0 %v609
        %619 = vmatmul.bf16.gmra.mxu0 %v606
        %v620 = vpop.f32.mrf.mxu0
        %v621 = vadd.f32 0.0, %v620
        %v622 = vpop.f32.mrf.mxu0
        %623 = vdwg.mxu0
        %v624 = vunpack.c.l.b16 %v595
        %v625 = vpack.c.b16 %v624, %v624
        %626 = vrot.lane.b32.xlu0 %v625, 96
        %v627 = vpop.permute.xlu0 %626
        %v629 = vsel %vm604, %v595, 0
        %v632 = vsel %vm604, %v627, 0
        %634 = vmatpush.bf16.xpose.msra.mxu0 0
        %635 = vmatpush.bf16.xpose.msra.mxu0 0
        %636 = vmatpush.bf16.xpose.msra.mxu0 0
        %637 = vmatpush.bf16.xpose.msra.mxu0 0
        %638 = vmatpush.bf16.xpose.msra.mxu0 0
        %639 = vmatpush.bf16.xpose.msra.mxu0 0
        %640 = vmatpush.bf16.xpose.msra.mxu0 0
        %641 = vmatpush.bf16.xpose.msra.mxu0 %v632
        %642 = vmatmul.bf16.gmra.mxu0 %v629
        %v643 = vpop.f32.mrf.mxu0
        %v644 = vadd.f32 0.0, %v643
        %v645 = vpop.f32.mrf.mxu0
        %646 = vdwg.mxu0
        %v647 = vunpack.c.l.b16 %v597
        %v648 = vpack.c.b16 %v647, %v647
        %649 = vrot.lane.b32.xlu0 %v648, 96
        %v650 = vpop.permute.xlu0 %649
        %v652 = vsel %vm604, %v597, 0
        %v655 = vsel %vm604, %v650, 0
        %657 = vmatpush.bf16.xpose.msra.mxu0 0
        %658 = vmatpush.bf16.xpose.msra.mxu0 0
        %659 = vmatpush.bf16.xpose.msra.mxu0 0
        %660 = vmatpush.bf16.xpose.msra.mxu0 0
        %661 = vmatpush.bf16.xpose.msra.mxu0 0
        %662 = vmatpush.bf16.xpose.msra.mxu0 0
        %663 = vmatpush.bf16.xpose.msra.mxu0 0
        %664 = vmatpush.bf16.xpose.msra.mxu0 %v655
        %665 = vmatmul.bf16.gmra.mxu0 %v652
        %v666 = vpop.f32.mrf.mxu0
        %v667 = vadd.f32 0.0, %v666
        %v668 = vpop.f32.mrf.mxu0
        %669 = vdwg.mxu0
        %v670 = vunpack.c.l.b16 %v599
        %v671 = vpack.c.b16 %v670, %v670
        %672 = vrot.lane.b32.xlu0 %v671, 96
        %v673 = vpop.permute.xlu0 %672
        %v675 = vsel %vm604, %v599, 0
        %v678 = vsel %vm604, %v673, 0
        %680 = vmatpush.bf16.xpose.msra.mxu0 0
        %681 = vmatpush.bf16.xpose.msra.mxu0 0
        %682 = vmatpush.bf16.xpose.msra.mxu0 0
        %683 = vmatpush.bf16.xpose.msra.mxu0 0
        %684 = vmatpush.bf16.xpose.msra.mxu0 0
        %685 = vmatpush.bf16.xpose.msra.mxu0 0
        %686 = vmatpush.bf16.xpose.msra.mxu0 0
        %687 = vmatpush.bf16.xpose.msra.mxu0 %v678
        %688 = vmatmul.bf16.gmra.mxu0 %v675
        %v689 = vpop.f32.mrf.mxu0
        %v690 = vadd.f32 0.0, %v689
        %v691 = vpop.f32.mrf.mxu0
        %692 = vdwg.mxu0
        %v693 = vsel %vm604, %v621, -inf
        %694 = vmax.xlane.f32.xlu0 %v693
        %v695 = vpop.xlane.xlu0 %694
        %v696 = vsel %vm604, %v644, -inf
        %697 = vmax.xlane.f32.xlu0 %v696
        %v698 = vpop.xlane.xlu0 %697
        %v699 = vsel %vm604, %v667, -inf
        %700 = vmax.xlane.f32.xlu0 %v699
        %v701 = vpop.xlane.xlu0 %700
        %v702 = vsel %vm604, %v690, -inf
        %703 = vmax.xlane.f32.xlu0 %v702
        %v704 = vpop.xlane.xlu0 %703
        %v705 = vsub.f32 %v621, %v695
        %v706 = vsub.f32 %v644, %v698
        %v707 = vsub.f32 %v667, %v701
        %v708 = vsub.f32 %v690, %v704
        %v709 = vmul.f32 %v705, 1.442695
        %v710 = vpow.pop %v709
        %v711 = vmul.f32 %v706, 1.442695
        %v712 = vpow.pop %v711
        %v713 = vmul.f32 %v707, 1.442695
        %v714 = vpow.pop %v713
        %v715 = vmul.f32 %v708, 1.442695
        %v716 = vpow.pop %v715
        %v717 = vsel %vm604, %v710, 0.0
        %718 = vadd.xlane.f32.xlu0 %v717
        %v719 = vpop.xlane.xlu0 %718
        %v720 = vsel %vm604, %v712, 0.0
        %721 = vadd.xlane.f32.xlu0 %v720
        %v722 = vpop.xlane.xlu0 %721
        %v723 = vsel %vm604, %v714, 0.0
        %724 = vadd.xlane.f32.xlu0 %v723
        %v725 = vpop.xlane.xlu0 %724
        %v726 = vsel %vm604, %v716, 0.0
        %727 = vadd.xlane.f32.xlu0 %v726
        %v728 = vpop.xlane.xlu0 %727
        %v729 = vrcp.pop %v719
        %v730 = vrcp.pop %v722
        %v731 = vrcp.pop %v725
        %v732 = vrcp.pop %v728
        %v733 = vmul.f32 %v710, %v729
        %v734 = vmul.f32 %v712, %v730
        %v735 = vmul.f32 %v714, %v731
        %v736 = vmul.f32 %v716, %v732
        %v737 = vpack.c.bf16 %v733, %v733
        %v738 = vpack.c.bf16 %v734, %v734
        %v739 = vpack.c.bf16 %v735, %v735
        %v740 = vpack.c.bf16 %v736, %v736
        %741 = vrot.lane.b32.xlu0 %v601, 64
        %v742 = vpop.permute.xlu0 %741
        %v744 = vsel %vm604, %v737, 0
        %vm746 = vcmask 1043456
        %v748 = vsel %vm746, %v742, 0
        %750 = vmatpush.bf16.msra.mxu0 0
        %751 = vmatpush.bf16.msra.mxu0 0
        %752 = vmatpush.bf16.msra.mxu0 0
        %753 = vmatpush.bf16.msra.mxu0 0
        %754 = vmatpush.bf16.msra.mxu0 0
        %755 = vmatpush.bf16.msra.mxu0 0
        %756 = vmatpush.bf16.msra.mxu0 0
        %757 = vmatpush.bf16.msra.mxu0 %v748
        %758 = vmatmul.bf16.gmra.mxu0 %v744
        %v759 = vpop.f32.mrf.mxu0
        %v760 = vadd.f32 0.0, %v759
        %v761 = vpop.f32.mrf.mxu0
        %762 = vdwg.mxu0
        %763 = vrot.lane.b32.xlu0 %v625, 64
        %v764 = vpop.permute.xlu0 %763
        %v766 = vsel %vm604, %v738, 0
        %v769 = vsel %vm746, %v764, 0
        %771 = vmatpush.bf16.msra.mxu0 0
        %772 = vmatpush.bf16.msra.mxu0 0
        %773 = vmatpush.bf16.msra.mxu0 0
        %774 = vmatpush.bf16.msra.mxu0 0
        %775 = vmatpush.bf16.msra.mxu0 0
        %776 = vmatpush.bf16.msra.mxu0 0
        %777 = vmatpush.bf16.msra.mxu0 0
        %778 = vmatpush.bf16.msra.mxu0 %v769
        %779 = vmatmul.bf16.gmra.mxu0 %v766
        %v780 = vpop.f32.mrf.mxu0
        %v781 = vadd.f32 0.0, %v780
        %v782 = vpop.f32.mrf.mxu0
        %783 = vdwg.mxu0
        %784 = vrot.lane.b32.xlu0 %v648, 64
        %v785 = vpop.permute.xlu0 %784
        %v787 = vsel %vm604, %v739, 0
        %v790 = vsel %vm746, %v785, 0
        %792 = vmatpush.bf16.msra.mxu0 0
        %793 = vmatpush.bf16.msra.mxu0 0
        %794 = vmatpush.bf16.msra.mxu0 0
        %795 = vmatpush.bf16.msra.mxu0 0
        %796 = vmatpush.bf16.msra.mxu0 0
        %797 = vmatpush.bf16.msra.mxu0 0
        %798 = vmatpush.bf16.msra.mxu0 0
        %799 = vmatpush.bf16.msra.mxu0 %v790
        %800 = vmatmul.bf16.gmra.mxu0 %v787
        %v801 = vpop.f32.mrf.mxu0
        %v802 = vadd.f32 0.0, %v801
        %v803 = vpop.f32.mrf.mxu0
        %804 = vdwg.mxu0
        %805 = vrot.lane.b32.xlu0 %v671, 64
        %v806 = vpop.permute.xlu0 %805
        %v808 = vsel %vm604, %v740, 0
        %v811 = vsel %vm746, %v806, 0
        %813 = vmatpush.bf16.msra.mxu0 0
        %814 = vmatpush.bf16.msra.mxu0 0
        %815 = vmatpush.bf16.msra.mxu0 0
        %816 = vmatpush.bf16.msra.mxu0 0
        %817 = vmatpush.bf16.msra.mxu0 0
        %818 = vmatpush.bf16.msra.mxu0 0
        %819 = vmatpush.bf16.msra.mxu0 0
        %820 = vmatpush.bf16.msra.mxu0 %v811
        %821 = vmatmul.bf16.gmra.mxu0 %v808
        %v822 = vpop.f32.mrf.mxu0
        %v823 = vadd.f32 0.0, %v822
        %v824 = vpop.f32.mrf.mxu0
        %825 = vdwg.mxu0
        %v826 = vpack.c.bf16 %v760, %v760
        %v827 = vpack.c.bf16 %v781, %v781
        %v828 = vpack.c.bf16 %v802, %v802
        %v829 = vpack.c.bf16 %v823, %v823
        %v831 = vunpack.c.l.b16 %v827
        %v832 = vpack.c.b16 %v831, %v831
        %833 = vrot.lane.b32.xlu0 %v832, 8
        %v834 = vpop.permute.xlu0 %833
        %v836 = vunpack.c.l.b16 %v828
        %v837 = vpack.c.b16 %v836, %v836
        %838 = vrot.lane.b32.xlu0 %v837, 16
        %v839 = vpop.permute.xlu0 %838
        %v841 = vunpack.c.l.b16 %v829
        %v842 = vpack.c.b16 %v841, %v841
        %843 = vrot.lane.b32.xlu0 %v842, 24
        %v844 = vpop.permute.xlu0 %843
        %v847 = vsel %vm604, %v826, %v834
        %vm848 = vcmask 130048
        %v850 = vsel %vm848, %v847, %v839
        %vm851 = vcmask 195584
        %v853 = vsel %vm851, %v850, %v844
        %v854 = vld [vmem:[%s3] sm:$0xf]
        %v855 = vld [vmem:[%s3 + $0x4] sm:$0xf]
        %v856 = vld [vmem:[%s3 + $0x8] sm:$0xf]
        %v857 = vld [vmem:[%s3 + $0xc] sm:$0xf]
        %v858 = vld [vmem:[#allocation4] sm:$0x1]
        %v860 = vperm.slane %v858, 0
        %v866 = vunpack.c.l.b16 %v854
        %v867 = vunpack.c.l.b16 %v855
        %v868 = vunpack.c.l.b16 %v856
        %v869 = vunpack.c.l.b16 %v857
        %v870 = vpack.c.b16 %v867, %v866
        %v871 = vpack.c.b16 %v869, %v868
        %v874 = vsel %vm575, %v853, 0
        %876 = vmatpush.bf16.msra.mxu0 0
        %877 = vmatpush.bf16.msra.mxu0 0
        %878 = vmatpush.bf16.msra.mxu0 0
        %879 = vmatpush.bf16.msra.mxu0 0
        %880 = vmatpush.bf16.msra.mxu0 0
        %881 = vmatpush.bf16.msra.mxu0 0
        %882 = vmatpush.bf16.msra.mxu0 %v871
        %883 = vmatpush.bf16.msra.mxu0 %v870
        %884 = vmatmul.bf16.gmra.mxu0 %v874
        %v885 = vpop.f32.mrf.mxu0
        %v886 = vadd.f32 %v860, %v885
        %v887 = vpop.f32.mrf.mxu0
        %888 = vdwg.mxu0
        %v889 = vunpack.c.l.bf16 %v554
        %v890 = vadd.f32 %v889, %v886
        %v891 = vsel %vm575, %v890, 0.0
        %892 = vadd.xlane.f32.xlu0 %v891
        %v893 = vpop.xlane.xlu0 %892
        %v894 = vrcp.pop 32.0
        %v895 = vmul.f32 32.0, %v894
        %v896 = vsub.f32 1.0, %v895
        %v897 = vmul.f32 %v894, %v896
        %v898 = vadd.f32 %v894, %v897
        %vm899 = vweird.f32 %v894
        %v900 = vsel %vm899, %v894, %v898
        %v901 = vmul.f32 %v893, %v900
        %v902 = vsub.f32 %v890, %v901
        %v903 = vmul.f32 %v902, %v902
        %v904 = vsel %vm575, %v903, 0.0
        %905 = vadd.xlane.f32.xlu0 %v904
        %v906 = vpop.xlane.xlu0 %905
        %v907 = vmul.f32 %v906, %v900
        %v908 = vadd.f32 %v907, 1e-05
        %v909 = vrsqrt.pop %v908
        %v910 = vmul.f32 %v909, %v908
        %v911 = vmul.f32 %v910, %v909
        %v912 = vmul.f32 0.5, %v911
        %v913 = vsub.f32 1.5, %v912
        %v914 = vmul.f32 %v909, %v913
        %vm915 = vweird.f32 %v908
        %vm916 = vweird.f32 %v909
        %vm917 = vmor %vm915, %vm916
        %v918 = vsel %vm917, %v909, %v914
        %v919 = vmul.f32 %v902, %v918
        %v920 = vld [vmem:[#allocation6] sm:$0x1]
        %v922 = vperm.slane %v920, 0
        %v924 = vmul.f32 %v919, %v922
        %v925 = vld [vmem:[#allocation7] sm:$0x1]
        %v927 = vperm.slane %v925, 0
        %v929 = vadd.f32 %v924, %v927
        %v930 = vpack.c.bf16 %v929, %v929
        %v931 = vld [vmem:[%s7] sm:$0xf]
        %v932 = vld [vmem:[%s7 + $0x4] sm:$0xf]
        %v933 = vld [vmem:[%s7 + $0x8] sm:$0xf]
        %v934 = vld [vmem:[%s7 + $0xc] sm:$0xf]
        %v935 = vld [vmem:[#allocation9] sm:$0x1]
        %v937 = vperm.slane %v935, 0
        %v943 = vunpack.c.l.b16 %v931
        %v944 = vunpack.c.l.b16 %v932
        %v945 = vunpack.c.l.b16 %v933
        %v946 = vunpack.c.l.b16 %v934
        %v947 = vpack.c.b16 %v944, %v943
        %v948 = vpack.c.b16 %v946, %v945
        %v952 = vsel %vm575, %v930, 0
        %954 = vmatpush.bf16.msra.mxu0 0
        %955 = vmatpush.bf16.msra.mxu0 0
        %956 = vmatpush.bf16.msra.mxu0 0
        %957 = vmatpush.bf16.msra.mxu0 0
        %958 = vmatpush.bf16.msra.mxu0 0
        %959 = vmatpush.bf16.msra.mxu0 0
        %960 = vmatpush.bf16.msra.mxu0 %v948
        %961 = vmatpush.bf16.msra.mxu0 %v947
        %962 = vmatmul.bf16.gmra.mxu0 %v952
        %v963 = vpop.f32.mrf.mxu0
        %v964 = vadd.f32 %v937, %v963
        %v965 = vpop.f32.mrf.mxu0
        %966 = vdwg.mxu0
        %v967 = vmax.f32 %v964, 0.0
        %v968 = vpack.c.bf16 %v967, %v967
        %v969 = vld [vmem:[%s9] sm:$0xf]
        %v970 = vld [vmem:[%s9 + $0x4] sm:$0xf]
        %v971 = vld [vmem:[%s9 + $0x8] sm:$0xf]
        %v972 = vld [vmem:[%s9 + $0xc] sm:$0xf]
        %v977 = vunpack.c.l.b16 %v969
        %v978 = vunpack.c.l.b16 %v970
        %v979 = vunpack.c.l.b16 %v971
        %v980 = vunpack.c.l.b16 %v972
        %v981 = vpack.c.b16 %v978, %v977
        %v982 = vpack.c.b16 %v980, %v979
        %v986 = vsel %vm575, %v968, 0
        %988 = vmatpush.bf16.msra.mxu0 0
        %989 = vmatpush.bf16.msra.mxu0 0
        %990 = vmatpush.bf16.msra.mxu0 0
        %991 = vmatpush.bf16.msra.mxu0 0
        %992 = vmatpush.bf16.msra.mxu0 0
        %993 = vmatpush.bf16.msra.mxu0 0
        %994 = vmatpush.bf16.msra.mxu0 %v982
        %995 = vmatpush.bf16.msra.mxu0 %v981
        %996 = vmatmul.bf16.gmra.mxu0 %v986
        %v997 = vpop.f32.mrf.mxu0
        %v998 = vadd.f32 0.0, %v997
        %v999 = vpop.f32.mrf.mxu0
        %1000 = vdwg.mxu0
        %v1001 = vadd.f32 %v967, %v998
        %v1002 = vld [vmem:[#allocation10] sm:$0x1]
        %v1004 = vperm.slane %v1002, 0
        %v1006 = vadd.f32 %v1001, %v1004
        %v1007 = vsel %vm575, %v1006, 0.0
        %1008 = vadd.xlane.f32.xlu0 %v1007
        %v1009 = vpop.xlane.xlu0 %1008
        %v1010 = vmul.f32 %v1009, %v900
        %v1011 = vsub.f32 %v1006, %v1010
        %v1012 = vmul.f32 %v1011, %v1011
        %v1013 = vsel %vm575, %v1012, 0.0
        %1014 = vadd.xlane.f32.xlu0 %v1013
        %v1015 = vpop.xlane.xlu0 %1014
        %v1016 = vmul.f32 %v1015, %v900
        %v1017 = vadd.f32 %v1016, 1e-05
        %v1018 = vrsqrt.pop %v1017
        %v1019 = vmul.f32 %v1018, %v1017
        %v1020 = vmul.f32 %v1019, %v1018
        %v1021 = vmul.f32 0.5, %v1020
        %v1022 = vsub.f32 1.5, %v1021
        %v1023 = vmul.f32 %v1018, %v1022
        %vm1024 = vweird.f32 %v1017
        %vm1025 = vweird.f32 %v1018
        %vm1026 = vmor %vm1024, %vm1025
        %v1027 = vsel %vm1026, %v1018, %v1023
        %v1028 = vmul.f32 %v1011, %v1027
        %v1029 = vld [vmem:[#allocation12] sm:$0x1]
        %v1031 = vperm.slane %v1029, 0
        %v1033 = vmul.f32 %v1028, %v1031
        %v1034 = vld [vmem:[#allocation13] sm:$0x1]
        %v1036 = vperm.slane %v1034, 0
        %v1038 = vadd.f32 %v1033, %v1036
        %v1039 = vpack.c.bf16 %v1038, %v1038
        %vm1040 = vcmask 257024
        %1041 = vst.msk [vmem:[%s552] sm:$0xf] %vm1040, %v1039
        %p1042 = scmp.lt.s32.totalorder %s29, 1
        %s1043 = scalar_select %p1042, %s29, 1
        %s1044 = smul.addr %s1043, 4
        %s1045 = scalar_lea.vmem %s13, %s1044
        // Predicated region
        $region105: #{transformer_decoder_forward.2} parent=71 // pred_check
          %p1046 = pneg %p325
        $region106: #{transformer_decoder_forward.2} parent=71 // pred_check_branch
          %1048 = sbr.rel (%p1046) target = $region108
        $region107: #{transformer_decoder_forward.2} parent=71 // pred_region
          _
        $region108: #{transformer_decoder_forward.2} parent=71 // pred_fallthru
          _
      $region72: #{transformer_decoder_forward.2} parent=5 // pred_fallthru
        _
      %p1049 = scmp.le.s32.totalorder 2, %s24
      // Predicated region
      $region109: #{transformer_decoder_forward.2} parent=5 // pred_check
        %p1050 = pneg %p1049
      $region110: #{transformer_decoder_forward.2} parent=5 // pred_check_branch
        %1052 = sbr.rel (%p1050) target = $region112
      $region111: #{transformer_decoder_forward.2} parent=5 // pred_region
        %s1053 = ssub.s32 %s24, 2
        // Predicated region
        $region113: #{transformer_decoder_forward.2} parent=111 // pred_check
          %p1054 = pneg %p331
        $region114: #{transformer_decoder_forward.2} parent=111 // pred_check_branch
          %1056 = sbr.rel (%p1054) target = $region116
        $region115: #{transformer_decoder_forward.2} parent=111 // pred_region
          %p1057 = scmp.lt.s32.totalorder %s30, 1
          %s1058 = scalar_select %p1057, %s30, 1
          %s1059 = smul.addr %s1058, 4
          %s1060 = scalar_lea.vmem %s13, %s1059
        $region116: #{transformer_decoder_forward.2} parent=111 // pred_fallthru
          _
      $region112: #{transformer_decoder_forward.2} parent=5 // pred_fallthru
        _
    $region6: #{transformer_decoder_forward.2} parent=1 // loop_footer
      %s28 = sadd.s32 1, %s24
    $region7: #{transformer_decoder_forward.2} parent=1 // loop_footer_branch
      %23 = sbr.rel target = $region3
    $region8: #{transformer_decoder_forward.2} parent=1 // loop_exit
      _
    %1061 = vsyncpa [#allocation3], 1
    %s1062 = scalar_lea.sflag [#allocation3], 1
    %1063 = vsyncpa %s1062, 1
    %1064 = vsyncpa [#allocation5], 1
    %1065 = vsyncpa [#allocation8], 1
    %1066 = vsyncpa [#allocation11], 1
    %1067 = vsyncpa [#allocation14], 1

// kernel: transformer_decoder_forward.3
$region0: #{transformer_decoder_forward.3}
  #allocation0 [shape = 'u32[]', space=smem, size = 0x4, offset = 0x4, fixed_abs, tag = 'smem constant byte address 0x4 - core index']
  #allocation1 [shape = 'u32[72,128]{1,0:T(1,128)}', space=vmem, size = 0x9000, scoped, tag = 'internal scratch']
  %s0 = inlined_call_operand.vmem [shape: bf16[2,8,32], index: 0, kind: input, shape index: {}]
  %s1 = inlined_call_operand.hbm [shape: bf16[32,96], index: 1, kind: input, shape index: {}]
  %s2 = inlined_call_operand.hbm [shape: f32[1,96], index: 2, kind: input, shape index: {}]
  %s3 = inlined_call_operand.hbm [shape: bf16[32,32], index: 3, kind: input, shape index: {}]
  %s4 = inlined_call_operand.hbm [shape: f32[1,32], index: 4, kind: input, shape index: {}]
  %s5 = inlined_call_operand.hbm [shape: f32[1,32], index: 5, kind: input, shape index: {}]
  %s6 = inlined_call_operand.vmem [shape: f32[1,32], index: 6, kind: input, shape index: {}]
  %s7 = inlined_call_operand.vmem [shape: bf16[32,32], index: 7, kind: input, shape index: {}]
  %s8 = inlined_call_operand.vmem [shape: f32[1,32], index: 8, kind: input, shape index: {}]
  %s9 = inlined_call_operand.hbm [shape: bf16[32,32], index: 9, kind: input, shape index: {}]
  %s10 = inlined_call_operand.vmem [shape: f32[1,32], index: 10, kind: input, shape index: {}]
  %s11 = inlined_call_operand.vmem [shape: f32[1,32], index: 11, kind: input, shape index: {}]
  %s12 = inlined_call_operand.vmem [shape: f32[1,32], index: 12, kind: input, shape index: {}]
  %s13 = inlined_call_operand.hbm [shape: f32[2,8,32], index: 13, kind: output, shape index: {}]
  %s14 = sld [smem:[#allocation0]]
  $region109: #{transformer_decoder_forward.3} parent=0
    _
  %s16 = ssub.s32 1, %s14
  %s17 = scalar_select 0, %s16, %s14
  $region1: #{transformer_decoder_forward.3} parent=0
    #allocation2 [shape = 'u8[8192]{0}', space=vmem, size = 0x2000, scoped, tag = 'input window, operand 1, single buffered']
    #allocation3 [shape = 's32[2]{0}', space=sflag, size = 0x8, scoped, tag = 'scoped memory for transformer_decoder_forward.3']
    #allocation4 [shape = 's32[2]{0}', space=sflag, size = 0x8, scoped, tag = 'scoped memory for transformer_decoder_forward.3']
    #allocation5 [shape = 'u8[512]{0}', space=vmem, size = 0x400, scoped, tag = 'input window, operand 2, single buffered']
    #allocation6 [shape = 's32[1]{0}', space=sflag, size = 0x4, scoped, tag = 'scoped memory for transformer_decoder_forward.3']
    #allocation7 [shape = 'u8[8192]{0}', space=vmem, size = 0x2000, scoped, tag = 'input window, operand 3, single buffered']
    #allocation8 [shape = 'u8[512]{0}', space=vmem, size = 0x400, scoped, tag = 'input window, operand 4, single buffered']
    #allocation9 [shape = 's32[1]{0}', space=sflag, size = 0x4, scoped, tag = 'scoped memory for transformer_decoder_forward.3']
    #allocation10 [shape = 'u8[512]{0}', space=vmem, size = 0x400, scoped, tag = 'input window, operand 5, single buffered']
    #allocation11 [shape = 'u8[8192]{0}', space=vmem, size = 0x2000, scoped, tag = 'input window, operand 9, single buffered']
    #allocation12 [shape = 's32[1]{0}', space=sflag, size = 0x4, scoped, tag = 'scoped memory for transformer_decoder_forward.3']
    #allocation13 [shape = 'u8[8192]{0}', space=vmem, size = 0x2000, scoped, tag = 'output window, operand 0']
    %18 = vsyncpa [#allocation3], 0
    %19 = vsyncpa [#allocation6], 0
    %20 = vsyncpa [#allocation9], 0
    %21 = vsyncpa [#allocation12], 0
    %22 = vsyncpa [#allocation4], 0
    %s23 = scalar_lea.sflag [#allocation4], 1
    %24 = vsyncpa %s23, 0
    loop: start=0, step=1, limit=4
    $region2: #{transformer_decoder_forward.3} parent=1 // loop_pre_header
      _
    $region3: #{transformer_decoder_forward.3} parent=1 // loop_header
      %s26 = sphi 0, %s30
      %p27 = scmp.ge.s32.totalorder %s26, 4
      %s36 = sphi 0, %s38
      %s39 = sphi 0, %s36
      %s40 = sphi 0, %s39
      %s56 = sphi 0, %s40
      %s60 = sphi 0, %s60
      %s62 = sphi 0, %s60
      %s63 = sphi 0, %s62
      %s77 = sphi 0, %s63
      %s81 = sphi 0, %s81
      %s83 = sphi 0, %s81
      %s84 = sphi 0, %s83
      %s98 = sphi 0, %s84
      %s102 = sphi 0, %s102
      %s104 = sphi 0, %s102
      %s105 = sphi 0, %s104
      %s119 = sphi 0, %s105
      %s123 = sphi 0, %s123
      %s125 = sphi 0, %s123
      %s126 = sphi 0, %s125
      %s140 = sphi 0, %s126
      %s144 = sphi 0, %s144
      %s146 = sphi 0, %s144
      %s147 = sphi 0, %s146
      %s161 = sphi 0, %s147
      %s165 = sphi 0, %s165
      %s167 = sphi 0, %s165
      %s168 = sphi 0, %s167
      %s182 = sphi 0, %s168
      %s186 = sphi 0, %s186
      %s188 = sphi 0, %s186
      %s189 = sphi 0, %s188
      %s203 = sphi 0, %s189
      %s207 = sphi 0, %s207
      %s209 = sphi 0, %s207
      %s210 = sphi 0, %s209
      %s224 = sphi 0, %s210
      %s228 = sphi 0, %s228
      %s230 = sphi 0, %s228
      %s231 = sphi 0, %s230
      %s245 = sphi 0, %s231
      %s249 = sphi 0, %s249
      %s251 = sphi 0, %s249
      %s252 = sphi 0, %s251
      %s266 = sphi 0, %s252
      %s270 = sphi 0, %s270
      %s272 = sphi 0, %s270
      %s273 = sphi 0, %s272
      %s287 = sphi 0, %s273
      %s291 = sphi 0, %s291
      %s293 = sphi 0, %s291
      %s294 = sphi 0, %s293
      %s308 = sphi 0, %s294
      %s314 = sphi 0, %s316
      %s317 = sphi 0, %s314
      %s318 = sphi 0, %s317
      %s334 = sphi 0, %s318
    $region4: #{transformer_decoder_forward.3} parent=1 // loop_header_branch
      %29 = sbr.rel (%p27) target = $region8
    $region5: #{transformer_decoder_forward.3} parent=1 // loop_body
      %s31 = ssub.s32 %s26, 1
      %s32 = ssub.s32 %s26, 2
      %s33 = sadd.s32 %s26, 1
      %s34 = ssub.s32 %s26, %s33
      %p35 = scmp.eq.s32.totalorder %s34, 0
      %s37 = sadd.s32 %s36, 1
      %s38 = scalar_select %p35, %s36, %s37
      %p41 = pneg %p35
      %p42 = scmp.eq.s32.totalorder %s26, 1
      %p43 = por %p41, %p42
      %p44 = scmp.ne.s32.totalorder %s36, %s39
      %p45 = scmp.eq.s32.totalorder %s26, 0
      %p46 = por %p44, %p45
      %p47 = scmp.ne.s32.totalorder %s36, %s39
      %p48 = scmp.eq.s32.totalorder %s31, 1
      %p49 = por %p47, %p48
      %p50 = scmp.ne.s32.totalorder %s39, %s40
      %p51 = scmp.eq.s32.totalorder %s31, 0
      %p52 = por %p50, %p51
      %p53 = scmp.ne.s32.totalorder %s39, %s40
      %p54 = scmp.eq.s32.totalorder %s32, 1
      %p55 = por %p53, %p54
      %p57 = scmp.ne.s32.totalorder %s40, %s56
      %p58 = scmp.eq.s32.totalorder %s32, 0
      %p59 = por %p57, %p58
      %s61 = sadd.s32 %s60, 1
      %p64 = scmp.eq.s32.totalorder %s26, 1
      %p65 = scmp.ne.s32.totalorder %s60, %s62
      %p66 = scmp.eq.s32.totalorder %s26, 0
      %p67 = por %p65, %p66
      %p68 = scmp.ne.s32.totalorder %s60, %s62
      %p69 = scmp.eq.s32.totalorder %s31, 1
      %p70 = por %p68, %p69
      %p71 = scmp.ne.s32.totalorder %s62, %s63
      %p72 = scmp.eq.s32.totalorder %s31, 0
      %p73 = por %p71, %p72
      %p74 = scmp.ne.s32.totalorder %s62, %s63
      %p75 = scmp.eq.s32.totalorder %s32, 1
      %p76 = por %p74, %p75
      %p78 = scmp.ne.s32.totalorder %s63, %s77
      %p79 = scmp.eq.s32.totalorder %s32, 0
      %p80 = por %p78, %p79
      %s82 = sadd.s32 %s81, 1
      %p85 = scmp.eq.s32.totalorder %s26, 1
      %p86 = scmp.ne.s32.totalorder %s81, %s83
      %p87 = scmp.eq.s32.totalorder %s26, 0
      %p88 = por %p86, %p87
      %p89 = scmp.ne.s32.totalorder %s81, %s83
      %p90 = scmp.eq.s32.totalorder %s31, 1
      %p91 = por %p89, %p90
      %p92 = scmp.ne.s32.totalorder %s83, %s84
      %p93 = scmp.eq.s32.totalorder %s31, 0
      %p94 = por %p92, %p93
      %p95 = scmp.ne.s32.totalorder %s83, %s84
      %p96 = scmp.eq.s32.totalorder %s32, 1
      %p97 = por %p95, %p96
      %p99 = scmp.ne.s32.totalorder %s84, %s98
      %p100 = scmp.eq.s32.totalorder %s32, 0
      %p101 = por %p99, %p100
      %s103 = sadd.s32 %s102, 1
      %p106 = scmp.eq.s32.totalorder %s26, 1
      %p107 = scmp.ne.s32.totalorder %s102, %s104
      %p108 = scmp.eq.s32.totalorder %s26, 0
      %p109 = por %p107, %p108
      %p110 = scmp.ne.s32.totalorder %s102, %s104
      %p111 = scmp.eq.s32.totalorder %s31, 1
      %p112 = por %p110, %p111
      %p113 = scmp.ne.s32.totalorder %s104, %s105
      %p114 = scmp.eq.s32.totalorder %s31, 0
      %p115 = por %p113, %p114
      %p116 = scmp.ne.s32.totalorder %s104, %s105
      %p117 = scmp.eq.s32.totalorder %s32, 1
      %p118 = por %p116, %p117
      %p120 = scmp.ne.s32.totalorder %s105, %s119
      %p121 = scmp.eq.s32.totalorder %s32, 0
      %p122 = por %p120, %p121
      %s124 = sadd.s32 %s123, 1
      %p127 = scmp.eq.s32.totalorder %s26, 1
      %p128 = scmp.ne.s32.totalorder %s123, %s125
      %p129 = scmp.eq.s32.totalorder %s26, 0
      %p130 = por %p128, %p129
      %p131 = scmp.ne.s32.totalorder %s123, %s125
      %p132 = scmp.eq.s32.totalorder %s31, 1
      %p133 = por %p131, %p132
      %p134 = scmp.ne.s32.totalorder %s125, %s126
      %p135 = scmp.eq.s32.totalorder %s31, 0
      %p136 = por %p134, %p135
      %p137 = scmp.ne.s32.totalorder %s125, %s126
      %p138 = scmp.eq.s32.totalorder %s32, 1
      %p139 = por %p137, %p138
      %p141 = scmp.ne.s32.totalorder %s126, %s140
      %p142 = scmp.eq.s32.totalorder %s32, 0
      %p143 = por %p141, %p142
      %s145 = sadd.s32 %s144, 1
      %p148 = scmp.eq.s32.totalorder %s26, 1
      %p149 = scmp.ne.s32.totalorder %s144, %s146
      %p150 = scmp.eq.s32.totalorder %s26, 0
      %p151 = por %p149, %p150
      %p152 = scmp.ne.s32.totalorder %s144, %s146
      %p153 = scmp.eq.s32.totalorder %s31, 1
      %p154 = por %p152, %p153
      %p155 = scmp.ne.s32.totalorder %s146, %s147
      %p156 = scmp.eq.s32.totalorder %s31, 0
      %p157 = por %p155, %p156
      %p158 = scmp.ne.s32.totalorder %s146, %s147
      %p159 = scmp.eq.s32.totalorder %s32, 1
      %p160 = por %p158, %p159
      %p162 = scmp.ne.s32.totalorder %s147, %s161
      %p163 = scmp.eq.s32.totalorder %s32, 0
      %p164 = por %p162, %p163
      %s166 = sadd.s32 %s165, 1
      %p169 = scmp.eq.s32.totalorder %s26, 1
      %p170 = scmp.ne.s32.totalorder %s165, %s167
      %p171 = scmp.eq.s32.totalorder %s26, 0
      %p172 = por %p170, %p171
      %p173 = scmp.ne.s32.totalorder %s165, %s167
      %p174 = scmp.eq.s32.totalorder %s31, 1
      %p175 = por %p173, %p174
      %p176 = scmp.ne.s32.totalorder %s167, %s168
      %p177 = scmp.eq.s32.totalorder %s31, 0
      %p178 = por %p176, %p177
      %p179 = scmp.ne.s32.totalorder %s167, %s168
      %p180 = scmp.eq.s32.totalorder %s32, 1
      %p181 = por %p179, %p180
      %p183 = scmp.ne.s32.totalorder %s168, %s182
      %p184 = scmp.eq.s32.totalorder %s32, 0
      %p185 = por %p183, %p184
      %s187 = sadd.s32 %s186, 1
      %p190 = scmp.eq.s32.totalorder %s26, 1
      %p191 = scmp.ne.s32.totalorder %s186, %s188
      %p192 = scmp.eq.s32.totalorder %s26, 0
      %p193 = por %p191, %p192
      %p194 = scmp.ne.s32.totalorder %s186, %s188
      %p195 = scmp.eq.s32.totalorder %s31, 1
      %p196 = por %p194, %p195
      %p197 = scmp.ne.s32.totalorder %s188, %s189
      %p198 = scmp.eq.s32.totalorder %s31, 0
      %p199 = por %p197, %p198
      %p200 = scmp.ne.s32.totalorder %s188, %s189
      %p201 = scmp.eq.s32.totalorder %s32, 1
      %p202 = por %p200, %p201
      %p204 = scmp.ne.s32.totalorder %s189, %s203
      %p205 = scmp.eq.s32.totalorder %s32, 0
      %p206 = por %p204, %p205
      %s208 = sadd.s32 %s207, 1
      %p211 = scmp.eq.s32.totalorder %s26, 1
      %p212 = scmp.ne.s32.totalorder %s207, %s209
      %p213 = scmp.eq.s32.totalorder %s26, 0
      %p214 = por %p212, %p213
      %p215 = scmp.ne.s32.totalorder %s207, %s209
      %p216 = scmp.eq.s32.totalorder %s31, 1
      %p217 = por %p215, %p216
      %p218 = scmp.ne.s32.totalorder %s209, %s210
      %p219 = scmp.eq.s32.totalorder %s31, 0
      %p220 = por %p218, %p219
      %p221 = scmp.ne.s32.totalorder %s209, %s210
      %p222 = scmp.eq.s32.totalorder %s32, 1
      %p223 = por %p221, %p222
      %p225 = scmp.ne.s32.totalorder %s210, %s224
      %p226 = scmp.eq.s32.totalorder %s32, 0
      %p227 = por %p225, %p226
      %s229 = sadd.s32 %s228, 1
      %p232 = scmp.eq.s32.totalorder %s26, 1
      %p233 = scmp.ne.s32.totalorder %s228, %s230
      %p234 = scmp.eq.s32.totalorder %s26, 0
      %p235 = por %p233, %p234
      %p236 = scmp.ne.s32.totalorder %s228, %s230
      %p237 = scmp.eq.s32.totalorder %s31, 1
      %p238 = por %p236, %p237
      %p239 = scmp.ne.s32.totalorder %s230, %s231
      %p240 = scmp.eq.s32.totalorder %s31, 0
      %p241 = por %p239, %p240
      %p242 = scmp.ne.s32.totalorder %s230, %s231
      %p243 = scmp.eq.s32.totalorder %s32, 1
      %p244 = por %p242, %p243
      %p246 = scmp.ne.s32.totalorder %s231, %s245
      %p247 = scmp.eq.s32.totalorder %s32, 0
      %p248 = por %p246, %p247
      %s250 = sadd.s32 %s249, 1
      %p253 = scmp.eq.s32.totalorder %s26, 1
      %p254 = scmp.ne.s32.totalorder %s249, %s251
      %p255 = scmp.eq.s32.totalorder %s26, 0
      %p256 = por %p254, %p255
      %p257 = scmp.ne.s32.totalorder %s249, %s251
      %p258 = scmp.eq.s32.totalorder %s31, 1
      %p259 = por %p257, %p258
      %p260 = scmp.ne.s32.totalorder %s251, %s252
      %p261 = scmp.eq.s32.totalorder %s31, 0
      %p262 = por %p260, %p261
      %p263 = scmp.ne.s32.totalorder %s251, %s252
      %p264 = scmp.eq.s32.totalorder %s32, 1
      %p265 = por %p263, %p264
      %p267 = scmp.ne.s32.totalorder %s252, %s266
      %p268 = scmp.eq.s32.totalorder %s32, 0
      %p269 = por %p267, %p268
      %s271 = sadd.s32 %s270, 1
      %p274 = scmp.eq.s32.totalorder %s26, 1
      %p275 = scmp.ne.s32.totalorder %s270, %s272
      %p276 = scmp.eq.s32.totalorder %s26, 0
      %p277 = por %p275, %p276
      %p278 = scmp.ne.s32.totalorder %s270, %s272
      %p279 = scmp.eq.s32.totalorder %s31, 1
      %p280 = por %p278, %p279
      %p281 = scmp.ne.s32.totalorder %s272, %s273
      %p282 = scmp.eq.s32.totalorder %s31, 0
      %p283 = por %p281, %p282
      %p284 = scmp.ne.s32.totalorder %s272, %s273
      %p285 = scmp.eq.s32.totalorder %s32, 1
      %p286 = por %p284, %p285
      %p288 = scmp.ne.s32.totalorder %s273, %s287
      %p289 = scmp.eq.s32.totalorder %s32, 0
      %p290 = por %p288, %p289
      %s292 = sadd.s32 %s291, 1
      %p295 = scmp.eq.s32.totalorder %s26, 1
      %p296 = scmp.ne.s32.totalorder %s291, %s293
      %p297 = scmp.eq.s32.totalorder %s26, 0
      %p298 = por %p296, %p297
      %p299 = scmp.ne.s32.totalorder %s291, %s293
      %p300 = scmp.eq.s32.totalorder %s31, 1
      %p301 = por %p299, %p300
      %p302 = scmp.ne.s32.totalorder %s293, %s294
      %p303 = scmp.eq.s32.totalorder %s31, 0
      %p304 = por %p302, %p303
      %p305 = scmp.ne.s32.totalorder %s293, %s294
      %p306 = scmp.eq.s32.totalorder %s32, 1
      %p307 = por %p305, %p306
      %p309 = scmp.ne.s32.totalorder %s294, %s308
      %p310 = scmp.eq.s32.totalorder %s32, 0
      %p311 = por %p309, %p310
      %s312 = ssub.s32 %s26, %s33
      %p313 = scmp.eq.s32.totalorder %s312, 0
      %s315 = sadd.s32 %s314, 1
      %s316 = scalar_select %p313, %s314, %s315
      %p319 = pneg %p313
      %p320 = scmp.eq.s32.totalorder %s26, 1
      %p321 = por %p319, %p320
      %p322 = scmp.ne.s32.totalorder %s314, %s317
      %p323 = scmp.eq.s32.totalorder %s26, 0
      %p324 = por %p322, %p323
      %p325 = scmp.ne.s32.totalorder %s314, %s317
      %p326 = scmp.eq.s32.totalorder %s31, 1
      %p327 = por %p325, %p326
      %p328 = scmp.ne.s32.totalorder %s317, %s318
      %p329 = scmp.eq.s32.totalorder %s31, 0
      %p330 = por %p328, %p329
      %p331 = scmp.ne.s32.totalorder %s317, %s318
      %p332 = scmp.eq.s32.totalorder %s32, 1
      %p333 = por %p331, %p332
      %p335 = scmp.ne.s32.totalorder %s318, %s334
      %p336 = scmp.eq.s32.totalorder %s32, 0
      %p337 = por %p335, %p336
      %p338 = scmp.le.s32.totalorder 1, %s26
      %p339 = scmp.lt.s32.totalorder %s26, 3
      %p340 = pnand %p338, %p339
      %p341 = pneg %p340
      // Predicated region
      $region9: #{transformer_decoder_forward.3} parent=5 // pred_check
        _
      $region10: #{transformer_decoder_forward.3} parent=5 // pred_check_branch
        %343 = sbr.rel (%p340) target = $region12
      $region11: #{transformer_decoder_forward.3} parent=5 // pred_region
        %s344 = ssub.s32 %s26, 1
        // Predicated region
        $region13: #{transformer_decoder_forward.3} parent=11 // pred_check
          %p345 = pneg %p73
        $region14: #{transformer_decoder_forward.3} parent=11 // pred_check_branch
          %347 = sbr.rel (%p345) target = $region16
        $region15: #{transformer_decoder_forward.3} parent=11 // pred_region
          %349 = vsyncadd [#allocation3], 0
          %s350 = sshll.u32 %s1, 4
          %s351 = int_to_ptr.hbm [resolvable:$true] %s350
          %s352 = sshll.u32 [#allocation2], 4
          %s353 = int_to_ptr.vmem [resolvable:$true] %s352
          %358 = dma.hbm_to_vmem [thread:$0]  %s351, 256, %s353, [#allocation3], 64, 64, 4
        $region16: #{transformer_decoder_forward.3} parent=11 // pred_fallthru
          _
        // Predicated region
        $region17: #{transformer_decoder_forward.3} parent=11 // pred_check
          %p359 = pneg %p94
        $region18: #{transformer_decoder_forward.3} parent=11 // pred_check_branch
          %361 = sbr.rel (%p359) target = $region20
        $region19: #{transformer_decoder_forward.3} parent=11 // pred_region
          %363 = vsyncadd [#allocation6], 0
          %s365 = sshll.u32 %s2, 4
          %s366 = int_to_ptr.hbm [resolvable:$true] %s365
          %s367 = sshll.u32 [#allocation5], 4
          %s368 = int_to_ptr.vmem [resolvable:$true] %s367
          %370 = dma.hbm_to_vmem [thread:$0]  %s366, 16, %s368, [#allocation6]
        $region20: #{transformer_decoder_forward.3} parent=11 // pred_fallthru
          _
        // Predicated region
        $region21: #{transformer_decoder_forward.3} parent=11 // pred_check
          %p371 = pneg %p115
        $region22: #{transformer_decoder_forward.3} parent=11 // pred_check_branch
          %373 = sbr.rel (%p371) target = $region24
        $region23: #{transformer_decoder_forward.3} parent=11 // pred_region
          %375 = vsyncadd [#allocation6], 0
          %s376 = sshll.u32 %s3, 4
          %s377 = int_to_ptr.hbm [resolvable:$true] %s376
          %s378 = sshll.u32 [#allocation7], 4
          %s379 = int_to_ptr.vmem [resolvable:$true] %s378
          %384 = dma.hbm_to_vmem [thread:$0]  %s377, 256, %s379, [#allocation6], 64, 64, 4
        $region24: #{transformer_decoder_forward.3} parent=11 // pred_fallthru
          _
        // Predicated region
        $region25: #{transformer_decoder_forward.3} parent=11 // pred_check
          %p385 = pneg %p136
        $region26: #{transformer_decoder_forward.3} parent=11 // pred_check_branch
          %387 = sbr.rel (%p385) target = $region28
        $region27: #{transformer_decoder_forward.3} parent=11 // pred_region
          %389 = vsyncadd [#allocation9], 0
          %s391 = sshll.u32 %s4, 4
          %s392 = int_to_ptr.hbm [resolvable:$true] %s391
          %s393 = sshll.u32 [#allocation8], 4
          %s394 = int_to_ptr.vmem [resolvable:$true] %s393
          %396 = dma.hbm_to_vmem [thread:$0]  %s392, 16, %s394, [#allocation9]
        $region28: #{transformer_decoder_forward.3} parent=11 // pred_fallthru
          _
        // Predicated region
        $region29: #{transformer_decoder_forward.3} parent=11 // pred_check
          %p397 = pneg %p157
        $region30: #{transformer_decoder_forward.3} parent=11 // pred_check_branch
          %399 = sbr.rel (%p397) target = $region32
        $region31: #{transformer_decoder_forward.3} parent=11 // pred_region
          %401 = vsyncadd [#allocation9], 0
          %s403 = sshll.u32 %s5, 4
          %s404 = int_to_ptr.hbm [resolvable:$true] %s403
          %s405 = sshll.u32 [#allocation10], 4
          %s406 = int_to_ptr.vmem [resolvable:$true] %s405
          %408 = dma.hbm_to_vmem [thread:$0]  %s404, 16, %s406, [#allocation9]
        $region32: #{transformer_decoder_forward.3} parent=11 // pred_fallthru
          _
        // Predicated region
        $region33: #{transformer_decoder_forward.3} parent=11 // pred_check
          %p409 = pneg %p178
        $region34: #{transformer_decoder_forward.3} parent=11 // pred_check_branch
          %411 = sbr.rel (%p409) target = $region36
        $region35: #{transformer_decoder_forward.3} parent=11 // pred_region
          _
        $region36: #{transformer_decoder_forward.3} parent=11 // pred_fallthru
          _
        // Predicated region
        $region37: #{transformer_decoder_forward.3} parent=11 // pred_check
          %p412 = pneg %p199
        $region38: #{transformer_decoder_forward.3} parent=11 // pred_check_branch
          %414 = sbr.rel (%p412) target = $region40
        $region39: #{transformer_decoder_forward.3} parent=11 // pred_region
          _
        $region40: #{transformer_decoder_forward.3} parent=11 // pred_fallthru
          _
        // Predicated region
        $region41: #{transformer_decoder_forward.3} parent=11 // pred_check
          %p415 = pneg %p220
        $region42: #{transformer_decoder_forward.3} parent=11 // pred_check_branch
          %417 = sbr.rel (%p415) target = $region44
        $region43: #{transformer_decoder_forward.3} parent=11 // pred_region
          _
        $region44: #{transformer_decoder_forward.3} parent=11 // pred_fallthru
          _
        // Predicated region
        $region45: #{transformer_decoder_forward.3} parent=11 // pred_check
          %p418 = pneg %p241
        $region46: #{transformer_decoder_forward.3} parent=11 // pred_check_branch
          %420 = sbr.rel (%p418) target = $region48
        $region47: #{transformer_decoder_forward.3} parent=11 // pred_region
          %422 = vsyncadd [#allocation12], 0
          %s423 = sshll.u32 %s9, 4
          %s424 = int_to_ptr.hbm [resolvable:$true] %s423
          %s425 = sshll.u32 [#allocation11], 4
          %s426 = int_to_ptr.vmem [resolvable:$true] %s425
          %431 = dma.hbm_to_vmem [thread:$0]  %s424, 256, %s426, [#allocation12], 64, 64, 4
        $region48: #{transformer_decoder_forward.3} parent=11 // pred_fallthru
          _
        // Predicated region
        $region49: #{transformer_decoder_forward.3} parent=11 // pred_check
          %p432 = pneg %p262
        $region50: #{transformer_decoder_forward.3} parent=11 // pred_check_branch
          %434 = sbr.rel (%p432) target = $region52
        $region51: #{transformer_decoder_forward.3} parent=11 // pred_region
          _
        $region52: #{transformer_decoder_forward.3} parent=11 // pred_fallthru
          _
        // Predicated region
        $region53: #{transformer_decoder_forward.3} parent=11 // pred_check
          %p435 = pneg %p283
        $region54: #{transformer_decoder_forward.3} parent=11 // pred_check_branch
          %437 = sbr.rel (%p435) target = $region56
        $region55: #{transformer_decoder_forward.3} parent=11 // pred_region
          _
        $region56: #{transformer_decoder_forward.3} parent=11 // pred_fallthru
          _
        // Predicated region
        $region57: #{transformer_decoder_forward.3} parent=11 // pred_check
          %p438 = pneg %p304
        $region58: #{transformer_decoder_forward.3} parent=11 // pred_check_branch
          %440 = sbr.rel (%p438) target = $region60
        $region59: #{transformer_decoder_forward.3} parent=11 // pred_region
          _
        $region60: #{transformer_decoder_forward.3} parent=11 // pred_fallthru
          _
      $region12: #{transformer_decoder_forward.3} parent=5 // pred_fallthru
        _
      %p441 = scmp.lt.s32.totalorder %s26, 2
      // Predicated region
      $region61: #{transformer_decoder_forward.3} parent=5 // pred_check
        %p442 = pneg %p441
      $region62: #{transformer_decoder_forward.3} parent=5 // pred_check_branch
        %444 = sbr.rel (%p442) target = $region64
      $region63: #{transformer_decoder_forward.3} parent=5 // pred_region
        // Predicated region
        $region65: #{transformer_decoder_forward.3} parent=63 // pred_check
          %p445 = pneg %p46
        $region66: #{transformer_decoder_forward.3} parent=63 // pred_check_branch
          %447 = sbr.rel (%p445) target = $region68
        $region67: #{transformer_decoder_forward.3} parent=63 // pred_region
          %p448 = scmp.lt.s32.totalorder %s26, 1
          %s449 = scalar_select %p448, %s26, 1
          %s450 = smul.addr %s449, 4
          %s451 = scalar_lea.vmem %s0, %s450
        $region68: #{transformer_decoder_forward.3} parent=63 // pred_fallthru
          _
      $region64: #{transformer_decoder_forward.3} parent=5 // pred_fallthru
        _
      %p452 = scmp.le.s32.totalorder 1, %s26
      %p453 = scmp.lt.s32.totalorder %s26, 3
      %p454 = pnand %p452, %p453
      %p455 = pneg %p454
      // Predicated region
      $region69: #{transformer_decoder_forward.3} parent=5 // pred_check
        _
      $region70: #{transformer_decoder_forward.3} parent=5 // pred_check_branch
        %457 = sbr.rel (%p454) target = $region72
      $region71: #{transformer_decoder_forward.3} parent=5 // pred_region
        %s458 = ssub.s32 %s26, 1
        // Predicated region
        $region73: #{transformer_decoder_forward.3} parent=71 // pred_check
          %p459 = pneg %p73
        $region74: #{transformer_decoder_forward.3} parent=71 // pred_check_branch
          %461 = sbr.rel (%p459) target = $region76
        $region75: #{transformer_decoder_forward.3} parent=71 // pred_region
          %463 = dma.done [#allocation3], 256
        $region76: #{transformer_decoder_forward.3} parent=71 // pred_fallthru
          _
        // Predicated region
        $region77: #{transformer_decoder_forward.3} parent=71 // pred_check
          %p464 = pneg %p94
        $region78: #{transformer_decoder_forward.3} parent=71 // pred_check_branch
          %466 = sbr.rel (%p464) target = $region80
        $region79: #{transformer_decoder_forward.3} parent=71 // pred_region
          %468 = dma.done [#allocation6], 16
        $region80: #{transformer_decoder_forward.3} parent=71 // pred_fallthru
          _
        // Predicated region
        $region81: #{transformer_decoder_forward.3} parent=71 // pred_check
          %p469 = pneg %p115
        $region82: #{transformer_decoder_forward.3} parent=71 // pred_check_branch
          %471 = sbr.rel (%p469) target = $region84
        $region83: #{transformer_decoder_forward.3} parent=71 // pred_region
          %473 = dma.done [#allocation6], 256
        $region84: #{transformer_decoder_forward.3} parent=71 // pred_fallthru
          _
        // Predicated region
        $region85: #{transformer_decoder_forward.3} parent=71 // pred_check
          %p474 = pneg %p136
        $region86: #{transformer_decoder_forward.3} parent=71 // pred_check_branch
          %476 = sbr.rel (%p474) target = $region88
        $region87: #{transformer_decoder_forward.3} parent=71 // pred_region
          %478 = dma.done [#allocation9], 16
        $region88: #{transformer_decoder_forward.3} parent=71 // pred_fallthru
          _
        // Predicated region
        $region89: #{transformer_decoder_forward.3} parent=71 // pred_check
          %p479 = pneg %p157
        $region90: #{transformer_decoder_forward.3} parent=71 // pred_check_branch
          %481 = sbr.rel (%p479) target = $region92
        $region91: #{transformer_decoder_forward.3} parent=71 // pred_region
          %483 = dma.done [#allocation9], 16
        $region92: #{transformer_decoder_forward.3} parent=71 // pred_fallthru
          _
        // Predicated region
        $region93: #{transformer_decoder_forward.3} parent=71 // pred_check
          %p484 = pneg %p241
        $region94: #{transformer_decoder_forward.3} parent=71 // pred_check_branch
          %486 = sbr.rel (%p484) target = $region96
        $region95: #{transformer_decoder_forward.3} parent=71 // pred_region
          %488 = dma.done [#allocation12], 256
        $region96: #{transformer_decoder_forward.3} parent=71 // pred_fallthru
          _
        %p489 = scmp.lt.s32.totalorder %s31, 1
        %s490 = scalar_select %p489, %s31, 1
        %s491 = smul.addr %s490, 4
        %s492 = scalar_lea.vmem %s0, %s491
        %p493 = pneg %p52
        %p494 = pneg %p49
        %p495 = pneg %p73
        %p496 = pneg %p70
        %p497 = pneg %p94
        %p498 = pneg %p91
        %p499 = pneg %p115
        %p500 = pneg %p112
        %p501 = pneg %p136
        %p502 = pneg %p133
        %p503 = pneg %p157
        %p504 = pneg %p154
        %p505 = pneg %p178
        %p506 = pneg %p175
        %p507 = pneg %p199
        %p508 = pneg %p196
        %p509 = pneg %p220
        %p510 = pneg %p217
        %p511 = pneg %p241
        %p512 = pneg %p238
        %p513 = pneg %p262
        %p514 = pneg %p259
        %p515 = pneg %p283
        %p516 = pneg %p280
        %p517 = pneg %p304
        %p518 = pneg %p301
        %p519 = pneg %p330
        %p520 = pneg %p327
        %s521 = sand.u32 %s317, 1
        %s522 = scalar_lea.sflag [#allocation4], %s521
        %s523 = sand.u32 %s317, 1
        %s524 = smul.addr %s523, 8
        %s525 = scalar_lea.vmem [#allocation13], %s524
        %p526 = scmp.lt.s32.totalorder %s31, 1
        %s527 = scalar_select %p526, %s31, 1
        %s528 = smul.addr %s527, 4
        %s529 = scalar_lea.vmem %s0, %s528
        %v531 = vld [vmem:[%s529] sm:$0xf]
        %v532 = vld [vmem:[#allocation2] sm:$0xf]
        %v533 = vld [vmem:[#allocation2 + $0x4] sm:$0xf]
        %v534 = vld [vmem:[#allocation2 + $0x8] sm:$0xf]
        %v535 = vld [vmem:[#allocation2 + $0xc] sm:$0xf]
        %v536 = vld [vmem:[#allocation5] sm:$0x1]
        %v538 = vperm.slane %v536, 0
        %v544 = vunpack.c.l.b16 %v532
        %v545 = vunpack.c.l.b16 %v533
        %v546 = vunpack.c.l.b16 %v534
        %v547 = vunpack.c.l.b16 %v535
        %v548 = vpack.c.b16 %v545, %v544
        %v549 = vpack.c.b16 %v547, %v546
        %vm552 = vcmask 261120
        %v554 = vsel %vm552, %v531, 0
        %556 = vmatpush.bf16.msra.mxu0 0
        %557 = vmatpush.bf16.msra.mxu0 0
        %558 = vmatpush.bf16.msra.mxu0 0
        %559 = vmatpush.bf16.msra.mxu0 0
        %560 = vmatpush.bf16.msra.mxu0 0
        %561 = vmatpush.bf16.msra.mxu0 0
        %562 = vmatpush.bf16.msra.mxu0 %v549
        %563 = vmatpush.bf16.msra.mxu0 %v548
        %564 = vmatmul.bf16.gmra.mxu0 %v554
        %v565 = vpop.f32.mrf.mxu0
        %v566 = vadd.f32 %v538, %v565
        %v567 = vpop.f32.mrf.mxu0
        %568 = vdwg.mxu0
        %v569 = vpack.c.bf16 %v566, %v566
        %571 = vrot.lane.b32.xlu0 %v569, 120
        %v572 = vpop.permute.xlu0 %571
        %573 = vrot.lane.b32.xlu0 %v569, 112
        %v574 = vpop.permute.xlu0 %573
        %575 = vrot.lane.b32.xlu0 %v569, 104
        %v576 = vpop.permute.xlu0 %575
        %v577 = vunpack.c.l.b16 %v569
        %v578 = vpack.c.b16 %v577, %v577
        %579 = vrot.lane.b32.xlu0 %v578, 96
        %v580 = vpop.permute.xlu0 %579
        %vm581 = vcmask 64512
        %v583 = vsel %vm581, %v569, 0
        %v586 = vsel %vm581, %v580, 0
        %588 = vmatpush.bf16.xpose.msra.mxu0 0
        %589 = vmatpush.bf16.xpose.msra.mxu0 0
        %590 = vmatpush.bf16.xpose.msra.mxu0 0
        %591 = vmatpush.bf16.xpose.msra.mxu0 0
        %592 = vmatpush.bf16.xpose.msra.mxu0 0
        %593 = vmatpush.bf16.xpose.msra.mxu0 0
        %594 = vmatpush.bf16.xpose.msra.mxu0 0
        %595 = vmatpush.bf16.xpose.msra.mxu0 %v586
        %596 = vmatmul.bf16.gmra.mxu0 %v583
        %v597 = vpop.f32.mrf.mxu0
        %v598 = vadd.f32 0.0, %v597
        %v599 = vpop.f32.mrf.mxu0
        %600 = vdwg.mxu0
        %v601 = vunpack.c.l.b16 %v572
        %v602 = vpack.c.b16 %v601, %v601
        %603 = vrot.lane.b32.xlu0 %v602, 96
        %v604 = vpop.permute.xlu0 %603
        %v606 = vsel %vm581, %v572, 0
        %v609 = vsel %vm581, %v604, 0
        %611 = vmatpush.bf16.xpose.msra.mxu0 0
        %612 = vmatpush.bf16.xpose.msra.mxu0 0
        %613 = vmatpush.bf16.xpose.msra.mxu0 0
        %614 = vmatpush.bf16.xpose.msra.mxu0 0
        %615 = vmatpush.bf16.xpose.msra.mxu0 0
        %616 = vmatpush.bf16.xpose.msra.mxu0 0
        %617 = vmatpush.bf16.xpose.msra.mxu0 0
        %618 = vmatpush.bf16.xpose.msra.mxu0 %v609
        %619 = vmatmul.bf16.gmra.mxu0 %v606
        %v620 = vpop.f32.mrf.mxu0
        %v621 = vadd.f32 0.0, %v620
        %v622 = vpop.f32.mrf.mxu0
        %623 = vdwg.mxu0
        %v624 = vunpack.c.l.b16 %v574
        %v625 = vpack.c.b16 %v624, %v624
        %626 = vrot.lane.b32.xlu0 %v625, 96
        %v627 = vpop.permute.xlu0 %626
        %v629 = vsel %vm581, %v574, 0
        %v632 = vsel %vm581, %v627, 0
        %634 = vmatpush.bf16.xpose.msra.mxu0 0
        %635 = vmatpush.bf16.xpose.msra.mxu0 0
        %636 = vmatpush.bf16.xpose.msra.mxu0 0
        %637 = vmatpush.bf16.xpose.msra.mxu0 0
        %638 = vmatpush.bf16.xpose.msra.mxu0 0
        %639 = vmatpush.bf16.xpose.msra.mxu0 0
        %640 = vmatpush.bf16.xpose.msra.mxu0 0
        %641 = vmatpush.bf16.xpose.msra.mxu0 %v632
        %642 = vmatmul.bf16.gmra.mxu0 %v629
        %v643 = vpop.f32.mrf.mxu0
        %v644 = vadd.f32 0.0, %v643
        %v645 = vpop.f32.mrf.mxu0
        %646 = vdwg.mxu0
        %v647 = vunpack.c.l.b16 %v576
        %v648 = vpack.c.b16 %v647, %v647
        %649 = vrot.lane.b32.xlu0 %v648, 96
        %v650 = vpop.permute.xlu0 %649
        %v652 = vsel %vm581, %v576, 0
        %v655 = vsel %vm581, %v650, 0
        %657 = vmatpush.bf16.xpose.msra.mxu0 0
        %658 = vmatpush.bf16.xpose.msra.mxu0 0
        %659 = vmatpush.bf16.xpose.msra.mxu0 0
        %660 = vmatpush.bf16.xpose.msra.mxu0 0
        %661 = vmatpush.bf16.xpose.msra.mxu0 0
        %662 = vmatpush.bf16.xpose.msra.mxu0 0
        %663 = vmatpush.bf16.xpose.msra.mxu0 0
        %664 = vmatpush.bf16.xpose.msra.mxu0 %v655
        %665 = vmatmul.bf16.gmra.mxu0 %v652
        %v666 = vpop.f32.mrf.mxu0
        %v667 = vadd.f32 0.0, %v666
        %v668 = vpop.f32.mrf.mxu0
        %669 = vdwg.mxu0
        %v670 = vsel %vm581, %v598, -inf
        %671 = vmax.xlane.f32.xlu0 %v670
        %v672 = vpop.xlane.xlu0 %671
        %v673 = vsel %vm581, %v621, -inf
        %674 = vmax.xlane.f32.xlu0 %v673
        %v675 = vpop.xlane.xlu0 %674
        %v676 = vsel %vm581, %v644, -inf
        %677 = vmax.xlane.f32.xlu0 %v676
        %v678 = vpop.xlane.xlu0 %677
        %v679 = vsel %vm581, %v667, -inf
        %680 = vmax.xlane.f32.xlu0 %v679
        %v681 = vpop.xlane.xlu0 %680
        %v682 = vsub.f32 %v598, %v672
        %v683 = vsub.f32 %v621, %v675
        %v684 = vsub.f32 %v644, %v678
        %v685 = vsub.f32 %v667, %v681
        %v686 = vmul.f32 %v682, 1.442695
        %v687 = vpow.pop %v686
        %v688 = vmul.f32 %v683, 1.442695
        %v689 = vpow.pop %v688
        %v690 = vmul.f32 %v684, 1.442695
        %v691 = vpow.pop %v690
        %v692 = vmul.f32 %v685, 1.442695
        %v693 = vpow.pop %v692
        %v694 = vsel %vm581, %v687, 0.0
        %695 = vadd.xlane.f32.xlu0 %v694
        %v696 = vpop.xlane.xlu0 %695
        %v697 = vsel %vm581, %v689, 0.0
        %698 = vadd.xlane.f32.xlu0 %v697
        %v699 = vpop.xlane.xlu0 %698
        %v700 = vsel %vm581, %v691, 0.0
        %701 = vadd.xlane.f32.xlu0 %v700
        %v702 = vpop.xlane.xlu0 %701
        %v703 = vsel %vm581, %v693, 0.0
        %704 = vadd.xlane.f32.xlu0 %v703
        %v705 = vpop.xlane.xlu0 %704
        %v706 = vrcp.pop %v696
        %v707 = vrcp.pop %v699
        %v708 = vrcp.pop %v702
        %v709 = vrcp.pop %v705
        %v710 = vmul.f32 %v687, %v706
        %v711 = vmul.f32 %v689, %v707
        %v712 = vmul.f32 %v691, %v708
        %v713 = vmul.f32 %v693, %v709
        %v714 = vpack.c.bf16 %v710, %v710
        %v715 = vpack.c.bf16 %v711, %v711
        %v716 = vpack.c.bf16 %v712, %v712
        %v717 = vpack.c.bf16 %v713, %v713
        %718 = vrot.lane.b32.xlu0 %v578, 64
        %v719 = vpop.permute.xlu0 %718
        %v721 = vsel %vm581, %v714, 0
        %vm723 = vcmask 1043456
        %v725 = vsel %vm723, %v719, 0
        %727 = vmatpush.bf16.msra.mxu0 0
        %728 = vmatpush.bf16.msra.mxu0 0
        %729 = vmatpush.bf16.msra.mxu0 0
        %730 = vmatpush.bf16.msra.mxu0 0
        %731 = vmatpush.bf16.msra.mxu0 0
        %732 = vmatpush.bf16.msra.mxu0 0
        %733 = vmatpush.bf16.msra.mxu0 0
        %734 = vmatpush.bf16.msra.mxu0 %v725
        %735 = vmatmul.bf16.gmra.mxu0 %v721
        %v736 = vpop.f32.mrf.mxu0
        %v737 = vadd.f32 0.0, %v736
        %v738 = vpop.f32.mrf.mxu0
        %739 = vdwg.mxu0
        %740 = vrot.lane.b32.xlu0 %v602, 64
        %v741 = vpop.permute.xlu0 %740
        %v743 = vsel %vm581, %v715, 0
        %v746 = vsel %vm723, %v741, 0
        %748 = vmatpush.bf16.msra.mxu0 0
        %749 = vmatpush.bf16.msra.mxu0 0
        %750 = vmatpush.bf16.msra.mxu0 0
        %751 = vmatpush.bf16.msra.mxu0 0
        %752 = vmatpush.bf16.msra.mxu0 0
        %753 = vmatpush.bf16.msra.mxu0 0
        %754 = vmatpush.bf16.msra.mxu0 0
        %755 = vmatpush.bf16.msra.mxu0 %v746
        %756 = vmatmul.bf16.gmra.mxu0 %v743
        %v757 = vpop.f32.mrf.mxu0
        %v758 = vadd.f32 0.0, %v757
        %v759 = vpop.f32.mrf.mxu0
        %760 = vdwg.mxu0
        %761 = vrot.lane.b32.xlu0 %v625, 64
        %v762 = vpop.permute.xlu0 %761
        %v764 = vsel %vm581, %v716, 0
        %v767 = vsel %vm723, %v762, 0
        %769 = vmatpush.bf16.msra.mxu0 0
        %770 = vmatpush.bf16.msra.mxu0 0
        %771 = vmatpush.bf16.msra.mxu0 0
        %772 = vmatpush.bf16.msra.mxu0 0
        %773 = vmatpush.bf16.msra.mxu0 0
        %774 = vmatpush.bf16.msra.mxu0 0
        %775 = vmatpush.bf16.msra.mxu0 0
        %776 = vmatpush.bf16.msra.mxu0 %v767
        %777 = vmatmul.bf16.gmra.mxu0 %v764
        %v778 = vpop.f32.mrf.mxu0
        %v779 = vadd.f32 0.0, %v778
        %v780 = vpop.f32.mrf.mxu0
        %781 = vdwg.mxu0
        %782 = vrot.lane.b32.xlu0 %v648, 64
        %v783 = vpop.permute.xlu0 %782
        %v785 = vsel %vm581, %v717, 0
        %v788 = vsel %vm723, %v783, 0
        %790 = vmatpush.bf16.msra.mxu0 0
        %791 = vmatpush.bf16.msra.mxu0 0
        %792 = vmatpush.bf16.msra.mxu0 0
        %793 = vmatpush.bf16.msra.mxu0 0
        %794 = vmatpush.bf16.msra.mxu0 0
        %795 = vmatpush.bf16.msra.mxu0 0
        %796 = vmatpush.bf16.msra.mxu0 0
        %797 = vmatpush.bf16.msra.mxu0 %v788
        %798 = vmatmul.bf16.gmra.mxu0 %v785
        %v799 = vpop.f32.mrf.mxu0
        %v800 = vadd.f32 0.0, %v799
        %v801 = vpop.f32.mrf.mxu0
        %802 = vdwg.mxu0
        %v803 = vpack.c.bf16 %v737, %v737
        %v804 = vpack.c.bf16 %v758, %v758
        %v805 = vpack.c.bf16 %v779, %v779
        %v806 = vpack.c.bf16 %v800, %v800
        %v808 = vunpack.c.l.b16 %v804
        %v809 = vpack.c.b16 %v808, %v808
        %810 = vrot.lane.b32.xlu0 %v809, 8
        %v811 = vpop.permute.xlu0 %810
        %v813 = vunpack.c.l.b16 %v805
        %v814 = vpack.c.b16 %v813, %v813
        %815 = vrot.lane.b32.xlu0 %v814, 16
        %v816 = vpop.permute.xlu0 %815
        %v818 = vunpack.c.l.b16 %v806
        %v819 = vpack.c.b16 %v818, %v818
        %820 = vrot.lane.b32.xlu0 %v819, 24
        %v821 = vpop.permute.xlu0 %820
        %v824 = vsel %vm581, %v803, %v811
        %vm825 = vcmask 130048
        %v827 = vsel %vm825, %v824, %v816
        %vm828 = vcmask 195584
        %v830 = vsel %vm828, %v827, %v821
        %v831 = vld [vmem:[#allocation7] sm:$0xf]
        %v832 = vld [vmem:[#allocation7 + $0x4] sm:$0xf]
        %v833 = vld [vmem:[#allocation7 + $0x8] sm:$0xf]
        %v834 = vld [vmem:[#allocation7 + $0xc] sm:$0xf]
        %v835 = vld [vmem:[#allocation8] sm:$0x1]
        %v837 = vperm.slane %v835, 0
        %v843 = vunpack.c.l.b16 %v831
        %v844 = vunpack.c.l.b16 %v832
        %v845 = vunpack.c.l.b16 %v833
        %v846 = vunpack.c.l.b16 %v834
        %v847 = vpack.c.b16 %v844, %v843
        %v848 = vpack.c.b16 %v846, %v845
        %v851 = vsel %vm552, %v830, 0
        %853 = vmatpush.bf16.msra.mxu0 0
        %854 = vmatpush.bf16.msra.mxu0 0
        %855 = vmatpush.bf16.msra.mxu0 0
        %856 = vmatpush.bf16.msra.mxu0 0
        %857 = vmatpush.bf16.msra.mxu0 0
        %858 = vmatpush.bf16.msra.mxu0 0
        %859 = vmatpush.bf16.msra.mxu0 %v848
        %860 = vmatpush.bf16.msra.mxu0 %v847
        %861 = vmatmul.bf16.gmra.mxu0 %v851
        %v862 = vpop.f32.mrf.mxu0
        %v863 = vadd.f32 %v837, %v862
        %v864 = vpop.f32.mrf.mxu0
        %865 = vdwg.mxu0
        %v866 = vunpack.c.l.bf16 %v531
        %v867 = vadd.f32 %v866, %v863
        %v868 = vsel %vm552, %v867, 0.0
        %869 = vadd.xlane.f32.xlu0 %v868
        %v870 = vpop.xlane.xlu0 %869
        %v871 = vrcp.pop 32.0
        %v872 = vmul.f32 32.0, %v871
        %v873 = vsub.f32 1.0, %v872
        %v874 = vmul.f32 %v871, %v873
        %v875 = vadd.f32 %v871, %v874
        %vm876 = vweird.f32 %v871
        %v877 = vsel %vm876, %v871, %v875
        %v878 = vmul.f32 %v870, %v877
        %v879 = vsub.f32 %v867, %v878
        %v880 = vmul.f32 %v879, %v879
        %v881 = vsel %vm552, %v880, 0.0
        %882 = vadd.xlane.f32.xlu0 %v881
        %v883 = vpop.xlane.xlu0 %882
        %v884 = vmul.f32 %v883, %v877
        %v885 = vadd.f32 %v884, 1e-05
        %v886 = vrsqrt.pop %v885
        %v887 = vmul.f32 %v886, %v885
        %v888 = vmul.f32 %v887, %v886
        %v889 = vmul.f32 0.5, %v888
        %v890 = vsub.f32 1.5, %v889
        %v891 = vmul.f32 %v886, %v890
        %vm892 = vweird.f32 %v885
        %vm893 = vweird.f32 %v886
        %vm894 = vmor %vm892, %vm893
        %v895 = vsel %vm894, %v886, %v891
        %v896 = vmul.f32 %v879, %v895
        %v897 = vld [vmem:[#allocation10] sm:$0x1]
        %v899 = vperm.slane %v897, 0
        %v901 = vmul.f32 %v896, %v899
        %v902 = vld [vmem:[%s6] sm:$0x1]
        %v904 = vperm.slane %v902, 0
        %v906 = vadd.f32 %v901, %v904
        %v907 = vpack.c.bf16 %v906, %v906
        %v908 = vld [vmem:[%s7] sm:$0xf]
        %v909 = vld [vmem:[%s7 + $0x4] sm:$0xf]
        %v910 = vld [vmem:[%s7 + $0x8] sm:$0xf]
        %v911 = vld [vmem:[%s7 + $0xc] sm:$0xf]
        %v912 = vld [vmem:[%s8] sm:$0x1]
        %v914 = vperm.slane %v912, 0
        %v920 = vunpack.c.l.b16 %v908
        %v921 = vunpack.c.l.b16 %v909
        %v922 = vunpack.c.l.b16 %v910
        %v923 = vunpack.c.l.b16 %v911
        %v924 = vpack.c.b16 %v921, %v920
        %v925 = vpack.c.b16 %v923, %v922
        %v929 = vsel %vm552, %v907, 0
        %931 = vmatpush.bf16.msra.mxu0 0
        %932 = vmatpush.bf16.msra.mxu0 0
        %933 = vmatpush.bf16.msra.mxu0 0
        %934 = vmatpush.bf16.msra.mxu0 0
        %935 = vmatpush.bf16.msra.mxu0 0
        %936 = vmatpush.bf16.msra.mxu0 0
        %937 = vmatpush.bf16.msra.mxu0 %v925
        %938 = vmatpush.bf16.msra.mxu0 %v924
        %939 = vmatmul.bf16.gmra.mxu0 %v929
        %v940 = vpop.f32.mrf.mxu0
        %v941 = vadd.f32 %v914, %v940
        %v942 = vpop.f32.mrf.mxu0
        %943 = vdwg.mxu0
        %v944 = vmax.f32 %v941, 0.0
        %v945 = vpack.c.bf16 %v944, %v944
        %v946 = vld [vmem:[#allocation11] sm:$0xf]
        %v947 = vld [vmem:[#allocation11 + $0x4] sm:$0xf]
        %v948 = vld [vmem:[#allocation11 + $0x8] sm:$0xf]
        %v949 = vld [vmem:[#allocation11 + $0xc] sm:$0xf]
        %v954 = vunpack.c.l.b16 %v946
        %v955 = vunpack.c.l.b16 %v947
        %v956 = vunpack.c.l.b16 %v948
        %v957 = vunpack.c.l.b16 %v949
        %v958 = vpack.c.b16 %v955, %v954
        %v959 = vpack.c.b16 %v957, %v956
        %v963 = vsel %vm552, %v945, 0
        %965 = vmatpush.bf16.msra.mxu0 0
        %966 = vmatpush.bf16.msra.mxu0 0
        %967 = vmatpush.bf16.msra.mxu0 0
        %968 = vmatpush.bf16.msra.mxu0 0
        %969 = vmatpush.bf16.msra.mxu0 0
        %970 = vmatpush.bf16.msra.mxu0 0
        %971 = vmatpush.bf16.msra.mxu0 %v959
        %972 = vmatpush.bf16.msra.mxu0 %v958
        %973 = vmatmul.bf16.gmra.mxu0 %v963
        %v974 = vpop.f32.mrf.mxu0
        %v975 = vadd.f32 0.0, %v974
        %v976 = vpop.f32.mrf.mxu0
        %977 = vdwg.mxu0
        %v978 = vadd.f32 %v944, %v975
        %v979 = vld [vmem:[%s10] sm:$0x1]
        %v981 = vperm.slane %v979, 0
        %v983 = vadd.f32 %v978, %v981
        %v984 = vsel %vm552, %v983, 0.0
        %985 = vadd.xlane.f32.xlu0 %v984
        %v986 = vpop.xlane.xlu0 %985
        %v987 = vmul.f32 %v986, %v877
        %v988 = vsub.f32 %v983, %v987
        %v989 = vmul.f32 %v988, %v988
        %v990 = vsel %vm552, %v989, 0.0
        %991 = vadd.xlane.f32.xlu0 %v990
        %v992 = vpop.xlane.xlu0 %991
        %v993 = vmul.f32 %v992, %v877
        %v994 = vadd.f32 %v993, 1e-05
        %v995 = vrsqrt.pop %v994
        %v996 = vmul.f32 %v995, %v994
        %v997 = vmul.f32 %v996, %v995
        %v998 = vmul.f32 0.5, %v997
        %v999 = vsub.f32 1.5, %v998
        %v1000 = vmul.f32 %v995, %v999
        %vm1001 = vweird.f32 %v994
        %vm1002 = vweird.f32 %v995
        %vm1003 = vmor %vm1001, %vm1002
        %v1004 = vsel %vm1003, %v995, %v1000
        %v1005 = vmul.f32 %v988, %v1004
        %v1006 = vld [vmem:[%s11] sm:$0x1]
        %v1008 = vperm.slane %v1006, 0
        %v1010 = vmul.f32 %v1005, %v1008
        %v1011 = vld [vmem:[%s12] sm:$0x1]
        %v1013 = vperm.slane %v1011, 0
        %v1015 = vadd.f32 %v1010, %v1013
        %1016 = vst.msk [vmem:[%s525] sm:$0xff] %vm552, %v1015
        %s1017 = sand.u32 %s317, 1
        %s1018 = scalar_lea.sflag [#allocation4], %s1017
        %s1019 = sand.u32 %s317, 1
        %s1020 = smul.addr %s1019, 8
        %s1021 = scalar_lea.vmem [#allocation13], %s1020
        // Predicated region
        $region97: #{transformer_decoder_forward.3} parent=71 // pred_check
          %p1022 = pneg %p327
        $region98: #{transformer_decoder_forward.3} parent=71 // pred_check_branch
          %1024 = sbr.rel (%p1022) target = $region100
        $region99: #{transformer_decoder_forward.3} parent=71 // pred_region
          %1026 = vsyncadd %s1018, 0
          %s1027 = smul.addr %s31, 8
          %s1028 = scalar_lea.hbm %s13, %s1027
          %s1030 = sshll.u32 %s1021, 4
          %s1031 = int_to_ptr.vmem [resolvable:$true] %s1030
          %s1032 = sshll.u32 %s1028, 4
          %s1033 = int_to_ptr.hbm [resolvable:$true] %s1032
          %1035 = dma.vmem_to_hbm [thread:$0]  %s1031, 128, %s1033, %s1018
        $region100: #{transformer_decoder_forward.3} parent=71 // pred_fallthru
          _
      $region72: #{transformer_decoder_forward.3} parent=5 // pred_fallthru
        _
      %p1036 = scmp.le.s32.totalorder 2, %s26
      // Predicated region
      $region101: #{transformer_decoder_forward.3} parent=5 // pred_check
        %p1037 = pneg %p1036
      $region102: #{transformer_decoder_forward.3} parent=5 // pred_check_branch
        %1039 = sbr.rel (%p1037) target = $region104
      $region103: #{transformer_decoder_forward.3} parent=5 // pred_region
        %s1040 = ssub.s32 %s26, 2
        // Predicated region
        $region105: #{transformer_decoder_forward.3} parent=103 // pred_check
          %p1041 = pneg %p333
        $region106: #{transformer_decoder_forward.3} parent=103 // pred_check_branch
          %1043 = sbr.rel (%p1041) target = $region108
        $region107: #{transformer_decoder_forward.3} parent=103 // pred_region
          %s1044 = sand.u32 %s318, 1
          %s1045 = scalar_lea.sflag [#allocation4], %s1044
          %s1046 = sand.u32 %s318, 1
          %s1047 = smul.addr %s1046, 8
          %s1048 = scalar_lea.vmem [#allocation13], %s1047
          %1050 = dma.done %s1045, 128
        $region108: #{transformer_decoder_forward.3} parent=103 // pred_fallthru
          _
      $region104: #{transformer_decoder_forward.3} parent=5 // pred_fallthru
        _
    $region6: #{transformer_decoder_forward.3} parent=1 // loop_footer
      %s30 = sadd.s32 1, %s26
    $region7: #{transformer_decoder_forward.3} parent=1 // loop_footer_branch
      %25 = sbr.rel target = $region3
    $region8: #{transformer_decoder_forward.3} parent=1 // loop_exit
      _
    %1051 = vsyncpa [#allocation3], 1
    %s1052 = scalar_lea.sflag [#allocation3], 1
    %1053 = vsyncpa %s1052, 1
    %1054 = vsyncpa [#allocation6], 1
    %1055 = vsyncpa [#allocation9], 1
    %1056 = vsyncpa [#allocation12], 1
    %1057 = vsyncpa [#allocation4], 1
    %s1058 = scalar_lea.sflag [#allocation4], 1
    %1059 = vsyncpa %s1058, 1

</llo_original>
